<compile_context>
chip_gen: v7x
topology: tpu7x:2x2x1
jax: 0.10.0
libtpu: 0.0.40
codegen_flags: <defaults>
</compile_context>

<pallas_src>
import jax
import jax.numpy as jnp
from jax import lax
from jax.experimental import pallas as pl
from jax.experimental.pallas import tpu as pltpu

EPS = 1e-5


# ---------------------------------------------------------------------------
# Fused kernel: conv1 -> BN -> ReLU -> conv2 -> BN -> +residual -> ReLU
# ---------------------------------------------------------------------------
def _resblock_kernel(x_ref, b1_ref, b2_ref, er_ref, ee_ref,
                     g1_ref, be1_ref, g2_ref, be2_ref,
                     o_ref, y1_ref):
    n, hp, wc = x_ref.shape           # (N, H+2, W*C) f32, zero row-halo per image
    h = hp - 2
    c = g1_ref.shape[1]
    w = wc // c
    m = n * h                         # rows of the packed activation matrix
    inv_cnt = 1.0 / float(n * h * w)  # BatchNorm divisor = N*H*W pixels

    def conv3(taps, b_ref):
        """3x3 conv as 3 accumulated lane-dense matmuls (one per kernel row dh)."""
        acc = jnp.dot(taps[0], b_ref[0], preferred_element_type=jnp.float32)
        acc = acc + jnp.dot(taps[1], b_ref[1], preferred_element_type=jnp.float32)
        acc = acc + jnp.dot(taps[2], b_ref[2], preferred_element_type=jnp.float32)
        return acc

    def bn(yv, g, b):
        """Training-mode BatchNorm, affine folded to one scale/shift pair."""
        s1 = jnp.sum(yv, axis=0, keepdims=True)            # (1, W*C) per-lane sums
        s2 = jnp.sum(yv * yv, axis=0, keepdims=True)
        s1c = jnp.dot(s1, er_ref[...], preferred_element_type=jnp.float32)  # (1, C)
        s2c = jnp.dot(s2, er_ref[...], preferred_element_type=jnp.float32)
        mean = s1c * inv_cnt
        # TODO(synk): single-pass E[x^2]-E[x]^2 is cancellation-prone at scale;
        #             switch to shifted / Welford partial sums once row-tiled.
        var = jnp.maximum(s2c * inv_cnt - mean * mean, 0.0)
        scale = g * lax.rsqrt(var + EPS)                    # (1, C)
        shift = b - mean * scale
        scale_l = jnp.dot(scale, ee_ref[...], preferred_element_type=jnp.float32)
        shift_l = jnp.dot(shift, ee_ref[...], preferred_element_type=jnp.float32)
        return yv * scale_l + shift_l                       # one mul + one add / elem

    # ---- conv1 -> BN -> ReLU ------------------------------------------------
    x_mid = x_ref[:, 1:1 + h, :].reshape(m, wc)             # f32, reused for residual
    taps1 = (x_ref[:, 0:h, :].reshape(m, wc).astype(jnp.bfloat16),
             x_mid.astype(jnp.bfloat16),
             x_ref[:, 2:2 + h, :].reshape(m, wc).astype(jnp.bfloat16))
    y = jnp.maximum(bn(conv3(taps1, b1_ref), g1_ref[...], be1_ref[...]), 0.0)

    # ---- stash activation in the row-padded VMEM scratch (halo rows only) ----
    zero_row = jnp.zeros((n, 1, wc), jnp.float32)
    y1_ref[:, 0:1, :] = zero_row                            # top halo row
    y1_ref[:, h + 1:h + 2, :] = zero_row                    # bottom halo row
    y1_ref[:, 1:1 + h, :] = y.reshape(n, h, wc)             # interior

    # ---- conv2 -> BN ----------------------------------------------------------
    taps2 = (y1_ref[:, 0:h, :].reshape(m, wc).astype(jnp.bfloat16),
             y.astype(jnp.bfloat16),                        # centre tap: live value
             y1_ref[:, 2:2 + h, :].reshape(m, wc).astype(jnp.bfloat16))
    z = bn(conv3(taps2, b2_ref), g2_ref[...], be2_ref[...])

    # ---- identity residual + ReLU, lane-dense store ---------------------------
    o_ref[...] = jnp.maximum(z + x_mid, 0.0).astype(o_ref.dtype)


# ---------------------------------------------------------------------------
# pallas_call wrapper (whole toy problem is one VMEM-resident block)
# ---------------------------------------------------------------------------
def _fused_residual_block(x_pad, b1, b2, e_red, e_exp, g1, be1, g2, be2):
    n, hp, wc = x_pad.shape
    h = hp - 2
    c = g1.shape[1]
    m = n * h
    return pl.pallas_call(
        _resblock_kernel,
        out_shape=jax.ShapeDtypeStruct((m, wc), jnp.float32),
        grid=(1,),
        in_specs=[
            pl.BlockSpec((n, hp, wc), lambda i: (0, 0, 0)),   # packed, row-padded input
            pl.BlockSpec((3, wc, wc), lambda i: (0, 0, 0)),   # conv1 banded weights bf16
            pl.BlockSpec((3, wc, wc), lambda i: (0, 0, 0)),   # conv2 banded weights bf16
            pl.BlockSpec((wc, c), lambda i: (0, 0)),          # lane -> channel reduce
            pl.BlockSpec((c, wc), lambda i: (0, 0)),          # channel -> lane expand
            pl.BlockSpec((1, c), lambda i: (0, 0)),           # gamma1
            pl.BlockSpec((1, c), lambda i: (0, 0)),           # beta1
            pl.BlockSpec((1, c), lambda i: (0, 0)),           # gamma2
            pl.BlockSpec((1, c), lambda i: (0, 0)),           # beta2
        ],
        out_specs=pl.BlockSpec((m, wc), lambda i: (0, 0)),
        scratch_shapes=[
            # intermediate activation + 1-row zero halo per image (~18 KB here)
            pltpu.VMEM((n, hp, wc), jnp.float32),
        ],
        compiler_params=pltpu.CompilerParams(
            dimension_semantics=("arbitrary",),
        ),
    )(x_pad, b1, b2, e_red, e_exp, g1, be1, g2, be2)


# ---------------------------------------------------------------------------
# JAX glue: layout plumbing only (lane packing, banded-weight construction)
# ---------------------------------------------------------------------------
@jax.jit
def residual_block_forward(x_nchw, params):
    w1, g1, b1, w2, g2, b2 = params
    n, c, h, w = x_nchw.shape
    wc = w * c

    # lane-packed activations: (N,C,H,W) -> (N,H,W*C); lane index = w*C + c
    x = jnp.transpose(x_nchw, (0, 2, 3, 1)).astype(jnp.float32).reshape(n, h, wc)
    x_pad = jnp.pad(x, ((0, 0), (1, 1), (0, 0)))            # zero H halo rows only

    def banded(wt):
        # PyTorch (Cout, Cin, 3, 3) -> 3 per-dh banded matrices (W*C, W*C):
        #   B_dh[w'*C + ci, w*C + co] = sum_dw [w' == w + dw - 1] * wt[co, ci, dh, dw]
        # folds the three dw taps and W-direction zero padding into one matmul.
        k = jnp.transpose(wt, (2, 3, 1, 0)).astype(jnp.float32)   # (3, 3, Cin, Cout)
        wp = jnp.arange(w)[:, None]
        wo = jnp.arange(w)[None, :]
        mats = []
        for dh in range(3):
            bmat = jnp.zeros((w, c, w, c), jnp.float32)
            for dw in range(3):
                ind = (wp == wo + (dw - 1)).astype(jnp.float32)   # (W, W)
                bmat = bmat + ind[:, None, :, None] * k[dh, dw][None, :, None, :]
            mats.append(bmat.reshape(wc, wc))
        return jnp.stack(mats, axis=0).astype(jnp.bfloat16)       # (3, W*C, W*C)

    # lane<->channel bookkeeping matrices for the in-kernel BatchNorm reductions
    e_red = jnp.tile(jnp.eye(c, dtype=jnp.float32), (w, 1))       # (W*C, C)
    e_exp = e_red.T                                               # (C, W*C)

    def bn_vec(v):
        return v.astype(jnp.float32).reshape(1, c)

    out = _fused_residual_block(x_pad, banded(w1), banded(w2), e_red, e_exp,
                                bn_vec(g1), bn_vec(b1), bn_vec(g2), bn_vec(b2))
    out = out.reshape(n, h, w, c)                                 # unpack lanes
    return jnp.transpose(out, (0, 3, 1, 2))                       # NHWC -> NCHW


# ---------------------------------------------------------------------------
# Pure-JAX reference for a sanity check
# ---------------------------------------------------------------------------
def _reference(x_nchw, params):
    w1, g1, b1, w2, g2, b2 = params
    x = jnp.transpose(x_nchw, (0, 2, 3, 1)).astype(jnp.float32)

    def conv(v, wt):
        return lax.conv_general_dilated(
            v, jnp.transpose(wt, (2, 3, 1, 0)), (1, 1), "SAME",
            dimension_numbers=("NHWC", "HWIO", "NHWC"),
            precision=lax.Precision.HIGHEST)

    def bn(y, g, b):
        mu = jnp.mean(y, axis=(0, 1, 2))
        var = jnp.mean((y - mu) ** 2, axis=(0, 1, 2))
        return (y - mu) * lax.rsqrt(var + EPS) * g + b

    hh = jnp.maximum(bn(conv(x, w1), g1, b1), 0.0)
    out = jnp.maximum(bn(conv(hh, w2), g2, b2) + x, 0.0)
    return jnp.transpose(out, (0, 3, 1, 2))


if __name__ == "__main__":
    # identity shortcut => in_ch == out_ch; W*C = 16*8 = 128 -> lane-dense packing
    N, C, H, W = 2, 8, 16, 16
    key = jax.random.PRNGKey(0)
    ks = jax.random.split(key, 7)

    x = jax.random.normal(ks[0], (N, C, H, W), jnp.float32)
    w1 = 0.1 * jax.random.normal(ks[1], (C, C, 3, 3), jnp.float32)   # conv1 weight
    w2 = 0.1 * jax.random.normal(ks[2], (C, C, 3, 3), jnp.float32)   # conv2 weight
    g1 = 1.0 + 0.1 * jax.random.normal(ks[3], (C,), jnp.float32)     # BN1 gamma
    b1 = 0.1 * jax.random.normal(ks[4], (C,), jnp.float32)           # BN1 beta
    g2 = 1.0 + 0.1 * jax.random.normal(ks[5], (C,), jnp.float32)     # BN2 gamma
    b2 = 0.1 * jax.random.normal(ks[6], (C,), jnp.float32)           # BN2 beta
    params = (w1, g1, b1, w2, g2, b2)

    out = jax.block_until_ready(residual_block_forward(x, params))
    ref = jax.block_until_ready(_reference(x, params))

    assert out.shape == (N, C, H, W), out.shape
    diff = jnp.abs(out - ref)
    max_err = float(jnp.max(diff))
    rel_err = float(jnp.max(diff / (jnp.abs(ref) + 1.0)))
    # bf16 MXU operands vs an f32 (HIGHEST-precision) reference
    assert max_err < 5e-2, f"max abs err {max_err}"
    assert rel_err < 5e-2, f"max rel err {rel_err}"
    print("KERNEL_OK")
</pallas_src>

<mosaic_0001>
module attributes {stable_mosaic.version = 11 : i64} {
  func.func @_resblock_kernel(%arg0: i32, %arg1: memref<2x18x128xf32, #tpu.memory_space<vmem>>, %arg2: memref<3x128x128xbf16, #tpu.memory_space<vmem>>, %arg3: memref<3x128x128xbf16, #tpu.memory_space<vmem>>, %arg4: memref<128x8xf32, #tpu.memory_space<vmem>>, %arg5: memref<8x128xf32, #tpu.memory_space<vmem>>, %arg6: memref<1x8xf32, #tpu.memory_space<vmem>>, %arg7: memref<1x8xf32, #tpu.memory_space<vmem>>, %arg8: memref<1x8xf32, #tpu.memory_space<vmem>>, %arg9: memref<1x8xf32, #tpu.memory_space<vmem>>, %arg10: memref<32x128xf32, #tpu.memory_space<vmem>>, %arg11: memref<2x18x128xf32, #tpu.memory_space<vmem>>) attributes {dimension_semantics = [#tpu.dimension_semantics<arbitrary>], iteration_bounds = array<i64: 1>, scalar_prefetch = 0 : i64, scratch_operands = 1 : i64, tpu.core_type = #tpu.core_type<tc>, window_params = [{pipeline_mode = #tpu.pipeline_mode<synchronous>, transform_indices = @transform_0, window_bounds = array<i64: 2, 18, 128>}, {pipeline_mode = #tpu.pipeline_mode<synchronous>, transform_indices = @transform_1, window_bounds = array<i64: 3, 128, 128>}, {pipeline_mode = #tpu.pipeline_mode<synchronous>, transform_indices = @transform_2, window_bounds = array<i64: 3, 128, 128>}, {pipeline_mode = #tpu.pipeline_mode<synchronous>, transform_indices = @transform_3, window_bounds = array<i64: 128, 8>}, {pipeline_mode = #tpu.pipeline_mode<synchronous>, transform_indices = @transform_4, window_bounds = array<i64: 8, 128>}, {pipeline_mode = #tpu.pipeline_mode<synchronous>, transform_indices = @transform_5, window_bounds = array<i64: 1, 8>}, {pipeline_mode = #tpu.pipeline_mode<synchronous>, transform_indices = @transform_6, window_bounds = array<i64: 1, 8>}, {pipeline_mode = #tpu.pipeline_mode<synchronous>, transform_indices = @transform_7, window_bounds = array<i64: 1, 8>}, {pipeline_mode = #tpu.pipeline_mode<synchronous>, transform_indices = @transform_8, window_bounds = array<i64: 1, 8>}, {pipeline_mode = #tpu.pipeline_mode<synchronous>, transform_indices = @transform_9, window_bounds = array<i64: 32, 128>}]} {
    %c0 = arith.constant 0 : index
    %c1 = arith.constant 1 : index
    %c0_0 = arith.constant 0 : index
    %0 = vector.load %arg1[%c0, %c1, %c0_0] : memref<2x18x128xf32, #tpu.memory_space<vmem>>, vector<2x16x128xf32>
    %1 = vector.shape_cast %0 : vector<2x16x128xf32> to vector<32x128xf32>
    %c0_1 = arith.constant 0 : index
    %c0_2 = arith.constant 0 : index
    %c0_3 = arith.constant 0 : index
    %2 = vector.load %arg1[%c0_1, %c0_2, %c0_3] : memref<2x18x128xf32, #tpu.memory_space<vmem>>, vector<2x16x128xf32>
    %3 = vector.shape_cast %2 : vector<2x16x128xf32> to vector<32x128xf32>
    %4 = arith.truncf %3 : vector<32x128xf32> to vector<32x128xbf16>
    %5 = arith.truncf %1 : vector<32x128xf32> to vector<32x128xbf16>
    %c0_4 = arith.constant 0 : index
    %c2 = arith.constant 2 : index
    %c0_5 = arith.constant 0 : index
    %6 = vector.load %arg1[%c0_4, %c2, %c0_5] : memref<2x18x128xf32, #tpu.memory_space<vmem>>, vector<2x16x128xf32>
    %7 = vector.shape_cast %6 : vector<2x16x128xf32> to vector<32x128xf32>
    %8 = arith.truncf %7 : vector<32x128xf32> to vector<32x128xbf16>
    %c0_6 = arith.constant 0 : index
    %c0_7 = arith.constant 0 : index
    %c0_8 = arith.constant 0 : index
    %9 = vector.load %arg2[%c0_6, %c0_7, %c0_8] : memref<3x128x128xbf16, #tpu.memory_space<vmem>>, vector<1x128x128xbf16>
    %10 = vector.shape_cast %9 : vector<1x128x128xbf16> to vector<128x128xbf16>
    %cst = arith.constant dense<0.000000e+00> : vector<32x128xf32>
    %11 = tpu.matmul %4, %10, %cst {dimension_numbers = #tpu.dot_dimension_numbers<[1], [0], [0], [1], [0, 0, 1, 1], [], []>} : vector<32x128xbf16>, vector<128x128xbf16>, vector<32x128xf32> -> vector<32x128xf32>
    %c1_9 = arith.constant 1 : index
    %c0_10 = arith.constant 0 : index
    %c0_11 = arith.constant 0 : index
    %12 = vector.load %arg2[%c1_9, %c0_10, %c0_11] : memref<3x128x128xbf16, #tpu.memory_space<vmem>>, vector<1x128x128xbf16>
    %13 = vector.shape_cast %12 : vector<1x128x128xbf16> to vector<128x128xbf16>
    %cst_12 = arith.constant dense<0.000000e+00> : vector<32x128xf32>
    %14 = tpu.matmul %5, %13, %cst_12 {dimension_numbers = #tpu.dot_dimension_numbers<[1], [0], [0], [1], [0, 0, 1, 1], [], []>} : vector<32x128xbf16>, vector<128x128xbf16>, vector<32x128xf32> -> vector<32x128xf32>
    %15 = arith.addf %11, %14 : vector<32x128xf32>
    %c2_13 = arith.constant 2 : index
    %c0_14 = arith.constant 0 : index
    %c0_15 = arith.constant 0 : index
    %16 = vector.load %arg2[%c2_13, %c0_14, %c0_15] : memref<3x128x128xbf16, #tpu.memory_space<vmem>>, vector<1x128x128xbf16>
    %17 = vector.shape_cast %16 : vector<1x128x128xbf16> to vector<128x128xbf16>
    %cst_16 = arith.constant dense<0.000000e+00> : vector<32x128xf32>
    %18 = tpu.matmul %8, %17, %cst_16 {dimension_numbers = #tpu.dot_dimension_numbers<[1], [0], [0], [1], [0, 0, 1, 1], [], []>} : vector<32x128xbf16>, vector<128x128xbf16>, vector<32x128xf32> -> vector<32x128xf32>
    %19 = arith.addf %15, %18 : vector<32x128xf32>
    %c0_17 = arith.constant 0 : index
    %c0_18 = arith.constant 0 : index
    %20 = vector.load %arg6[%c0_17, %c0_18] : memref<1x8xf32, #tpu.memory_space<vmem>>, vector<1x8xf32>
    %c0_19 = arith.constant 0 : index
    %c0_20 = arith.constant 0 : index
    %21 = vector.load %arg7[%c0_19, %c0_20] : memref<1x8xf32, #tpu.memory_space<vmem>>, vector<1x8xf32>
    %cst_21 = arith.constant dense<0.000000e+00> : vector<128xf32>
    %22 = vector.multi_reduction <add>, %19, %cst_21 [0] : vector<32x128xf32> to vector<128xf32>
    %23 = vector.shape_cast %22 : vector<128xf32> to vector<1x128xf32>
    %24 = arith.mulf %19, %19 : vector<32x128xf32>
    %cst_22 = arith.constant dense<0.000000e+00> : vector<128xf32>
    %25 = vector.multi_reduction <add>, %24, %cst_22 [0] : vector<32x128xf32> to vector<128xf32>
    %26 = vector.shape_cast %25 : vector<128xf32> to vector<1x128xf32>
    %c0_23 = arith.constant 0 : index
    %c0_24 = arith.constant 0 : index
    %27 = vector.load %arg4[%c0_23, %c0_24] : memref<128x8xf32, #tpu.memory_space<vmem>>, vector<128x8xf32>
    %cst_25 = arith.constant dense<0.000000e+00> : vector<1x8xf32>
    %28 = tpu.matmul %23, %27, %cst_25 {dimension_numbers = #tpu.dot_dimension_numbers<[1], [0], [0], [1], [0, 0, 1, 1], [], []>} : vector<1x128xf32>, vector<128x8xf32>, vector<1x8xf32> -> vector<1x8xf32>
    %c0_26 = arith.constant 0 : index
    %c0_27 = arith.constant 0 : index
    %29 = vector.load %arg4[%c0_26, %c0_27] : memref<128x8xf32, #tpu.memory_space<vmem>>, vector<128x8xf32>
    %cst_28 = arith.constant dense<0.000000e+00> : vector<1x8xf32>
    %30 = tpu.matmul %26, %29, %cst_28 {dimension_numbers = #tpu.dot_dimension_numbers<[1], [0], [0], [1], [0, 0, 1, 1], [], []>} : vector<1x128xf32>, vector<128x8xf32>, vector<1x8xf32> -> vector<1x8xf32>
    %cst_29 = arith.constant 0.001953125 : f32
    %31 = vector.broadcast %cst_29 : f32 to vector<1x8xf32>
    %32 = arith.mulf %28, %31 : vector<1x8xf32>
    %cst_30 = arith.constant 0.001953125 : f32
    %33 = vector.broadcast %cst_30 : f32 to vector<1x8xf32>
    %34 = arith.mulf %30, %33 : vector<1x8xf32>
    %35 = arith.mulf %32, %32 : vector<1x8xf32>
    %36 = arith.subf %34, %35 : vector<1x8xf32>
    %cst_31 = arith.constant 0.000000e+00 : f32
    %37 = vector.broadcast %cst_31 : f32 to vector<1x8xf32>
    %38 = arith.maximumf %36, %37 : vector<1x8xf32>
    %cst_32 = arith.constant 9.99999974E-6 : f32
    %39 = vector.broadcast %cst_32 : f32 to vector<1x8xf32>
    %40 = arith.addf %38, %39 : vector<1x8xf32>
    %41 = math.rsqrt %40 : vector<1x8xf32>
    %42 = arith.mulf %20, %41 : vector<1x8xf32>
    %43 = arith.mulf %32, %42 : vector<1x8xf32>
    %44 = arith.subf %21, %43 : vector<1x8xf32>
    %c0_33 = arith.constant 0 : index
    %c0_34 = arith.constant 0 : index
    %45 = vector.load %arg5[%c0_33, %c0_34] : memref<8x128xf32, #tpu.memory_space<vmem>>, vector<8x128xf32>
    %cst_35 = arith.constant dense<0.000000e+00> : vector<1x128xf32>
    %46 = tpu.matmul %42, %45, %cst_35 {dimension_numbers = #tpu.dot_dimension_numbers<[1], [0], [0], [1], [0, 0, 1, 1], [], []>} : vector<1x8xf32>, vector<8x128xf32>, vector<1x128xf32> -> vector<1x128xf32>
    %c0_36 = arith.constant 0 : index
    %c0_37 = arith.constant 0 : index
    %47 = vector.load %arg5[%c0_36, %c0_37] : memref<8x128xf32, #tpu.memory_space<vmem>>, vector<8x128xf32>
    %cst_38 = arith.constant dense<0.000000e+00> : vector<1x128xf32>
    %48 = tpu.matmul %44, %47, %cst_38 {dimension_numbers = #tpu.dot_dimension_numbers<[1], [0], [0], [1], [0, 0, 1, 1], [], []>} : vector<1x8xf32>, vector<8x128xf32>, vector<1x128xf32> -> vector<1x128xf32>
    %49 = vector.broadcast %46 : vector<1x128xf32> to vector<32x128xf32>
    %50 = arith.mulf %19, %49 : vector<32x128xf32>
    %51 = vector.broadcast %48 : vector<1x128xf32> to vector<32x128xf32>
    %52 = arith.addf %50, %51 : vector<32x128xf32>
    %cst_39 = arith.constant 0.000000e+00 : f32
    %53 = vector.broadcast %cst_39 : f32 to vector<32x128xf32>
    %54 = arith.maximumf %52, %53 : vector<32x128xf32>
    %cst_40 = arith.constant 0.000000e+00 : f32
    %55 = vector.broadcast %cst_40 : f32 to vector<2x1x128xf32>
    %c0_41 = arith.constant 0 : index
    %c0_42 = arith.constant 0 : index
    %c0_43 = arith.constant 0 : index
    %56 = vector.load %arg11[%c0_41, %c0_42, %c0_43] : memref<2x18x128xf32, #tpu.memory_space<vmem>>, vector<2x1x128xf32>
    tpu.vector_store %arg11[%c0_41, %c0_42, %c0_43], %55 {strides = array<i32>} : memref<2x18x128xf32, #tpu.memory_space<vmem>>, vector<2x1x128xf32>,
    %c0_44 = arith.constant 0 : index
    %c17 = arith.constant 17 : index
    %c0_45 = arith.constant 0 : index
    %57 = vector.load %arg11[%c0_44, %c17, %c0_45] : memref<2x18x128xf32, #tpu.memory_space<vmem>>, vector<2x1x128xf32>
    tpu.vector_store %arg11[%c0_44, %c17, %c0_45], %55 {strides = array<i32>} : memref<2x18x128xf32, #tpu.memory_space<vmem>>, vector<2x1x128xf32>,
    %58 = vector.shape_cast %54 : vector<32x128xf32> to vector<2x16x128xf32>
    %c0_46 = arith.constant 0 : index
    %c1_47 = arith.constant 1 : index
    %c0_48 = arith.constant 0 : index
    %59 = vector.load %arg11[%c0_46, %c1_47, %c0_48] : memref<2x18x128xf32, #tpu.memory_space<vmem>>, vector<2x16x128xf32>
    tpu.vector_store %arg11[%c0_46, %c1_47, %c0_48], %58 {strides = array<i32>} : memref<2x18x128xf32, #tpu.memory_space<vmem>>, vector<2x16x128xf32>,
    %c0_49 = arith.constant 0 : index
    %c0_50 = arith.constant 0 : index
    %c0_51 = arith.constant 0 : index
    %60 = vector.load %arg11[%c0_49, %c0_50, %c0_51] : memref<2x18x128xf32, #tpu.memory_space<vmem>>, vector<2x16x128xf32>
    %61 = vector.shape_cast %60 : vector<2x16x128xf32> to vector<32x128xf32>
    %62 = arith.truncf %61 : vector<32x128xf32> to vector<32x128xbf16>
    %63 = arith.truncf %54 : vector<32x128xf32> to vector<32x128xbf16>
    %c0_52 = arith.constant 0 : index
    %c2_53 = arith.constant 2 : index
    %c0_54 = arith.constant 0 : index
    %64 = vector.load %arg11[%c0_52, %c2_53, %c0_54] : memref<2x18x128xf32, #tpu.memory_space<vmem>>, vector<2x16x128xf32>
    %65 = vector.shape_cast %64 : vector<2x16x128xf32> to vector<32x128xf32>
    %66 = arith.truncf %65 : vector<32x128xf32> to vector<32x128xbf16>
    %c0_55 = arith.constant 0 : index
    %c0_56 = arith.constant 0 : index
    %c0_57 = arith.constant 0 : index
    %67 = vector.load %arg3[%c0_55, %c0_56, %c0_57] : memref<3x128x128xbf16, #tpu.memory_space<vmem>>, vector<1x128x128xbf16>
    %68 = vector.shape_cast %67 : vector<1x128x128xbf16> to vector<128x128xbf16>
    %cst_58 = arith.constant dense<0.000000e+00> : vector<32x128xf32>
    %69 = tpu.matmul %62, %68, %cst_58 {dimension_numbers = #tpu.dot_dimension_numbers<[1], [0], [0], [1], [0, 0, 1, 1], [], []>} : vector<32x128xbf16>, vector<128x128xbf16>, vector<32x128xf32> -> vector<32x128xf32>
    %c1_59 = arith.constant 1 : index
    %c0_60 = arith.constant 0 : index
    %c0_61 = arith.constant 0 : index
    %70 = vector.load %arg3[%c1_59, %c0_60, %c0_61] : memref<3x128x128xbf16, #tpu.memory_space<vmem>>, vector<1x128x128xbf16>
    %71 = vector.shape_cast %70 : vector<1x128x128xbf16> to vector<128x128xbf16>
    %cst_62 = arith.constant dense<0.000000e+00> : vector<32x128xf32>
    %72 = tpu.matmul %63, %71, %cst_62 {dimension_numbers = #tpu.dot_dimension_numbers<[1], [0], [0], [1], [0, 0, 1, 1], [], []>} : vector<32x128xbf16>, vector<128x128xbf16>, vector<32x128xf32> -> vector<32x128xf32>
    %73 = arith.addf %69, %72 : vector<32x128xf32>
    %c2_63 = arith.constant 2 : index
    %c0_64 = arith.constant 0 : index
    %c0_65 = arith.constant 0 : index
    %74 = vector.load %arg3[%c2_63, %c0_64, %c0_65] : memref<3x128x128xbf16, #tpu.memory_space<vmem>>, vector<1x128x128xbf16>
    %75 = vector.shape_cast %74 : vector<1x128x128xbf16> to vector<128x128xbf16>
    %cst_66 = arith.constant dense<0.000000e+00> : vector<32x128xf32>
    %76 = tpu.matmul %66, %75, %cst_66 {dimension_numbers = #tpu.dot_dimension_numbers<[1], [0], [0], [1], [0, 0, 1, 1], [], []>} : vector<32x128xbf16>, vector<128x128xbf16>, vector<32x128xf32> -> vector<32x128xf32>
    %77 = arith.addf %73, %76 : vector<32x128xf32>
    %c0_67 = arith.constant 0 : index
    %c0_68 = arith.constant 0 : index
    %78 = vector.load %arg8[%c0_67, %c0_68] : memref<1x8xf32, #tpu.memory_space<vmem>>, vector<1x8xf32>
    %c0_69 = arith.constant 0 : index
    %c0_70 = arith.constant 0 : index
    %79 = vector.load %arg9[%c0_69, %c0_70] : memref<1x8xf32, #tpu.memory_space<vmem>>, vector<1x8xf32>
    %cst_71 = arith.constant dense<0.000000e+00> : vector<128xf32>
    %80 = vector.multi_reduction <add>, %77, %cst_71 [0] : vector<32x128xf32> to vector<128xf32>
    %81 = vector.shape_cast %80 : vector<128xf32> to vector<1x128xf32>
    %82 = arith.mulf %77, %77 : vector<32x128xf32>
    %cst_72 = arith.constant dense<0.000000e+00> : vector<128xf32>
    %83 = vector.multi_reduction <add>, %82, %cst_72 [0] : vector<32x128xf32> to vector<128xf32>
    %84 = vector.shape_cast %83 : vector<128xf32> to vector<1x128xf32>
    %c0_73 = arith.constant 0 : index
    %c0_74 = arith.constant 0 : index
    %85 = vector.load %arg4[%c0_73, %c0_74] : memref<128x8xf32, #tpu.memory_space<vmem>>, vector<128x8xf32>
    %cst_75 = arith.constant dense<0.000000e+00> : vector<1x8xf32>
    %86 = tpu.matmul %81, %85, %cst_75 {dimension_numbers = #tpu.dot_dimension_numbers<[1], [0], [0], [1], [0, 0, 1, 1], [], []>} : vector<1x128xf32>, vector<128x8xf32>, vector<1x8xf32> -> vector<1x8xf32>
    %c0_76 = arith.constant 0 : index
    %c0_77 = arith.constant 0 : index
    %87 = vector.load %arg4[%c0_76, %c0_77] : memref<128x8xf32, #tpu.memory_space<vmem>>, vector<128x8xf32>
    %cst_78 = arith.constant dense<0.000000e+00> : vector<1x8xf32>
    %88 = tpu.matmul %84, %87, %cst_78 {dimension_numbers = #tpu.dot_dimension_numbers<[1], [0], [0], [1], [0, 0, 1, 1], [], []>} : vector<1x128xf32>, vector<128x8xf32>, vector<1x8xf32> -> vector<1x8xf32>
    %cst_79 = arith.constant 0.001953125 : f32
    %89 = vector.broadcast %cst_79 : f32 to vector<1x8xf32>
    %90 = arith.mulf %86, %89 : vector<1x8xf32>
    %cst_80 = arith.constant 0.001953125 : f32
    %91 = vector.broadcast %cst_80 : f32 to vector<1x8xf32>
    %92 = arith.mulf %88, %91 : vector<1x8xf32>
    %93 = arith.mulf %90, %90 : vector<1x8xf32>
    %94 = arith.subf %92, %93 : vector<1x8xf32>
    %cst_81 = arith.constant 0.000000e+00 : f32
    %95 = vector.broadcast %cst_81 : f32 to vector<1x8xf32>
    %96 = arith.maximumf %94, %95 : vector<1x8xf32>
    %cst_82 = arith.constant 9.99999974E-6 : f32
    %97 = vector.broadcast %cst_82 : f32 to vector<1x8xf32>
    %98 = arith.addf %96, %97 : vector<1x8xf32>
    %99 = math.rsqrt %98 : vector<1x8xf32>
    %100 = arith.mulf %78, %99 : vector<1x8xf32>
    %101 = arith.mulf %90, %100 : vector<1x8xf32>
    %102 = arith.subf %79, %101 : vector<1x8xf32>
    %c0_83 = arith.constant 0 : index
    %c0_84 = arith.constant 0 : index
    %103 = vector.load %arg5[%c0_83, %c0_84] : memref<8x128xf32, #tpu.memory_space<vmem>>, vector<8x128xf32>
    %cst_85 = arith.constant dense<0.000000e+00> : vector<1x128xf32>
    %104 = tpu.matmul %100, %103, %cst_85 {dimension_numbers = #tpu.dot_dimension_numbers<[1], [0], [0], [1], [0, 0, 1, 1], [], []>} : vector<1x8xf32>, vector<8x128xf32>, vector<1x128xf32> -> vector<1x128xf32>
    %c0_86 = arith.constant 0 : index
    %c0_87 = arith.constant 0 : index
    %105 = vector.load %arg5[%c0_86, %c0_87] : memref<8x128xf32, #tpu.memory_space<vmem>>, vector<8x128xf32>
    %cst_88 = arith.constant dense<0.000000e+00> : vector<1x128xf32>
    %106 = tpu.matmul %102, %105, %cst_88 {dimension_numbers = #tpu.dot_dimension_numbers<[1], [0], [0], [1], [0, 0, 1, 1], [], []>} : vector<1x8xf32>, vector<8x128xf32>, vector<1x128xf32> -> vector<1x128xf32>
    %107 = vector.broadcast %104 : vector<1x128xf32> to vector<32x128xf32>
    %108 = arith.mulf %77, %107 : vector<32x128xf32>
    %109 = vector.broadcast %106 : vector<1x128xf32> to vector<32x128xf32>
    %110 = arith.addf %108, %109 : vector<32x128xf32>
    %111 = arith.addf %110, %1 : vector<32x128xf32>
    %cst_89 = arith.constant 0.000000e+00 : f32
    %112 = vector.broadcast %cst_89 : f32 to vector<32x128xf32>
    %113 = arith.maximumf %111, %112 : vector<32x128xf32>
    %c0_90 = arith.constant 0 : index
    %c0_91 = arith.constant 0 : index
    %114 = vector.load %arg10[%c0_90, %c0_91] : memref<32x128xf32, #tpu.memory_space<vmem>>, vector<32x128xf32>
    tpu.vector_store %arg10[%c0_90, %c0_91], %113 {strides = array<i32>} : memref<32x128xf32, #tpu.memory_space<vmem>>, vector<32x128xf32>,
    return
  }
  func.func @transform_0(%arg0: i32) -> (i32, i32, i32) {
    %c0_i32 = arith.constant 0 : i32
    %c0_i32_0 = arith.constant 0 : i32
    %c0_i32_1 = arith.constant 0 : i32
    %c0_i32_2 = arith.constant 0 : i32
    return %c0_i32, %c0_i32_0, %c0_i32_1 : i32, i32, i32
  }
  func.func @transform_1(%arg0: i32) -> (i32, i32, i32) {
    %c0_i32 = arith.constant 0 : i32
    %c0_i32_0 = arith.constant 0 : i32
    %c0_i32_1 = arith.constant 0 : i32
    %c0_i32_2 = arith.constant 0 : i32
    return %c0_i32, %c0_i32_0, %c0_i32_1 : i32, i32, i32
  }
  func.func @transform_2(%arg0: i32) -> (i32, i32, i32) {
    %c0_i32 = arith.constant 0 : i32
    %c0_i32_0 = arith.constant 0 : i32
    %c0_i32_1 = arith.constant 0 : i32
    %c0_i32_2 = arith.constant 0 : i32
    return %c0_i32, %c0_i32_0, %c0_i32_1 : i32, i32, i32
  }
  func.func @transform_3(%arg0: i32) -> (i32, i32) {
    %c0_i32 = arith.constant 0 : i32
    %c0_i32_0 = arith.constant 0 : i32
    %c0_i32_1 = arith.constant 0 : i32
    return %c0_i32, %c0_i32_0 : i32, i32
  }
  func.func @transform_4(%arg0: i32) -> (i32, i32) {
    %c0_i32 = arith.constant 0 : i32
    %c0_i32_0 = arith.constant 0 : i32
    %c0_i32_1 = arith.constant 0 : i32
    return %c0_i32, %c0_i32_0 : i32, i32
  }
  func.func @transform_5(%arg0: i32) -> (i32, i32) {
    %c0_i32 = arith.constant 0 : i32
    %c0_i32_0 = arith.constant 0 : i32
    %c0_i32_1 = arith.constant 0 : i32
    return %c0_i32, %c0_i32_0 : i32, i32
  }
  func.func @transform_6(%arg0: i32) -> (i32, i32) {
    %c0_i32 = arith.constant 0 : i32
    %c0_i32_0 = arith.constant 0 : i32
    %c0_i32_1 = arith.constant 0 : i32
    return %c0_i32, %c0_i32_0 : i32, i32
  }
  func.func @transform_7(%arg0: i32) -> (i32, i32) {
    %c0_i32 = arith.constant 0 : i32
    %c0_i32_0 = arith.constant 0 : i32
    %c0_i32_1 = arith.constant 0 : i32
    return %c0_i32, %c0_i32_0 : i32, i32
  }
  func.func @transform_8(%arg0: i32) -> (i32, i32) {
    %c0_i32 = arith.constant 0 : i32
    %c0_i32_0 = arith.constant 0 : i32
    %c0_i32_1 = arith.constant 0 : i32
    return %c0_i32, %c0_i32_0 : i32, i32
  }
  func.func @transform_9(%arg0: i32) -> (i32, i32) {
    %c0_i32 = arith.constant 0 : i32
    %c0_i32_0 = arith.constant 0 : i32
    %c0_i32_1 = arith.constant 0 : i32
    return %c0_i32, %c0_i32_0 : i32, i32
  }
}

</mosaic_0001>

<llo_original>
// kernel: tile.9
$region0: #{tile.9}
  %s0 = inlined_call_operand.vmem [shape: f32[16,8,8], index: 0, kind: input, shape index: {}]
  %s1 = inlined_call_operand.vmem [shape: f32[128,8], index: 1, kind: output, shape index: {}]
  %s2 = smov 3
  %v3 = vld [vmem:[%s0] ss:$16 sm:%s2]
  %s4 = smov 12
  %v5 = vld [vmem:[%s0] ss:$16 sm:%s4]
  %vm6 = vcmask 1043458
  %v7 = vsel %vm6, %v5, %v3
  %s8 = smov 48
  %v9 = vld [vmem:[%s0] ss:$16 sm:%s8]
  %vm10 = vcmask 1045508
  %v11 = vsel %vm10, %v9, %v7
  %s12 = smov 192
  %v13 = vld [vmem:[%s0] ss:$16 sm:%s12]
  %vm14 = vcmask 1047558
  %v15 = vsel %vm14, %v13, %v11
  %vm16 = vcmask 64512
  %17 = vst.msk [vmem:[%s1] sm:$0xff] %vm16, %v15
  %s18 = scalar_lea.vmem %s0, 15
  %s19 = smov 3
  %v20 = vld [vmem:[%s18] ss:$16 sm:%s19]
  %s21 = scalar_lea.vmem %s0, 15
  %s22 = smov 12
  %v23 = vld [vmem:[%s21] ss:$16 sm:%s22]
  %vm24 = vcmask 1043458
  %v25 = vsel %vm24, %v23, %v20
  %s26 = scalar_lea.vmem %s0, 15
  %s27 = smov 48
  %v28 = vld [vmem:[%s26] ss:$16 sm:%s27]
  %vm29 = vcmask 1045508
  %v30 = vsel %vm29, %v28, %v25
  %s31 = scalar_lea.vmem %s0, 15
  %s32 = smov 192
  %v33 = vld [vmem:[%s31] ss:$16 sm:%s32]
  %vm34 = vcmask 1047558
  %v35 = vsel %vm34, %v33, %v30
  %36 = vrot.lane.b32.xlu0 %v35, 120
  %v37 = vpop.permute.xlu0 %36
  %vm38 = vcmask 1048512
  %39 = vst.msk [vmem:[%s1] sm:$0xff] %vm38, %v37
  %s40 = scalar_lea.vmem %s0, 14
  %s41 = smov 3
  %v42 = vld [vmem:[%s40] ss:$16 sm:%s41]
  %s43 = scalar_lea.vmem %s0, 14
  %s44 = smov 12
  %v45 = vld [vmem:[%s43] ss:$16 sm:%s44]
  %vm46 = vcmask 1043458
  %v47 = vsel %vm46, %v45, %v42
  %s48 = scalar_lea.vmem %s0, 14
  %s49 = smov 48
  %v50 = vld [vmem:[%s48] ss:$16 sm:%s49]
  %vm51 = vcmask 1045508
  %v52 = vsel %vm51, %v50, %v47
  %s53 = scalar_lea.vmem %s0, 14
  %s54 = smov 192
  %v55 = vld [vmem:[%s53] ss:$16 sm:%s54]
  %vm56 = vcmask 1047558
  %v57 = vsel %vm56, %v55, %v52
  %58 = vrot.lane.b32.xlu0 %v57, 112
  %v59 = vpop.permute.xlu0 %58
  %vm60 = vcmask 982912
  %61 = vst.msk [vmem:[%s1] sm:$0xff] %vm60, %v59
  %s62 = scalar_lea.vmem %s0, 13
  %s63 = smov 3
  %v64 = vld [vmem:[%s62] ss:$16 sm:%s63]
  %s65 = scalar_lea.vmem %s0, 13
  %s66 = smov 12
  %v67 = vld [vmem:[%s65] ss:$16 sm:%s66]
  %vm68 = vcmask 1043458
  %v69 = vsel %vm68, %v67, %v64
  %s70 = scalar_lea.vmem %s0, 13
  %s71 = smov 48
  %v72 = vld [vmem:[%s70] ss:$16 sm:%s71]
  %vm73 = vcmask 1045508
  %v74 = vsel %vm73, %v72, %v69
  %s75 = scalar_lea.vmem %s0, 13
  %s76 = smov 192
  %v77 = vld [vmem:[%s75] ss:$16 sm:%s76]
  %vm78 = vcmask 1047558
  %v79 = vsel %vm78, %v77, %v74
  %80 = vrot.lane.b32.xlu0 %v79, 104
  %v81 = vpop.permute.xlu0 %80
  %vm82 = vcmask 917312
  %83 = vst.msk [vmem:[%s1] sm:$0xff] %vm82, %v81
  %s84 = scalar_lea.vmem %s0, 12
  %s85 = smov 3
  %v86 = vld [vmem:[%s84] ss:$16 sm:%s85]
  %s87 = scalar_lea.vmem %s0, 12
  %s88 = smov 12
  %v89 = vld [vmem:[%s87] ss:$16 sm:%s88]
  %vm90 = vcmask 1043458
  %v91 = vsel %vm90, %v89, %v86
  %s92 = scalar_lea.vmem %s0, 12
  %s93 = smov 48
  %v94 = vld [vmem:[%s92] ss:$16 sm:%s93]
  %vm95 = vcmask 1045508
  %v96 = vsel %vm95, %v94, %v91
  %s97 = scalar_lea.vmem %s0, 12
  %s98 = smov 192
  %v99 = vld [vmem:[%s97] ss:$16 sm:%s98]
  %vm100 = vcmask 1047558
  %v101 = vsel %vm100, %v99, %v96
  %102 = vrot.lane.b32.xlu0 %v101, 96
  %v103 = vpop.permute.xlu0 %102
  %vm104 = vcmask 851712
  %105 = vst.msk [vmem:[%s1] sm:$0xff] %vm104, %v103
  %s106 = scalar_lea.vmem %s0, 11
  %s107 = smov 3
  %v108 = vld [vmem:[%s106] ss:$16 sm:%s107]
  %s109 = scalar_lea.vmem %s0, 11
  %s110 = smov 12
  %v111 = vld [vmem:[%s109] ss:$16 sm:%s110]
  %vm112 = vcmask 1043458
  %v113 = vsel %vm112, %v111, %v108
  %s114 = scalar_lea.vmem %s0, 11
  %s115 = smov 48
  %v116 = vld [vmem:[%s114] ss:$16 sm:%s115]
  %vm117 = vcmask 1045508
  %v118 = vsel %vm117, %v116, %v113
  %s119 = scalar_lea.vmem %s0, 11
  %s120 = smov 192
  %v121 = vld [vmem:[%s119] ss:$16 sm:%s120]
  %vm122 = vcmask 1047558
  %v123 = vsel %vm122, %v121, %v118
  %124 = vrot.lane.b32.xlu0 %v123, 88
  %v125 = vpop.permute.xlu0 %124
  %vm126 = vcmask 786112
  %127 = vst.msk [vmem:[%s1] sm:$0xff] %vm126, %v125
  %s128 = scalar_lea.vmem %s0, 10
  %s129 = smov 3
  %v130 = vld [vmem:[%s128] ss:$16 sm:%s129]
  %s131 = scalar_lea.vmem %s0, 10
  %s132 = smov 12
  %v133 = vld [vmem:[%s131] ss:$16 sm:%s132]
  %vm134 = vcmask 1043458
  %v135 = vsel %vm134, %v133, %v130
  %s136 = scalar_lea.vmem %s0, 10
  %s137 = smov 48
  %v138 = vld [vmem:[%s136] ss:$16 sm:%s137]
  %vm139 = vcmask 1045508
  %v140 = vsel %vm139, %v138, %v135
  %s141 = scalar_lea.vmem %s0, 10
  %s142 = smov 192
  %v143 = vld [vmem:[%s141] ss:$16 sm:%s142]
  %vm144 = vcmask 1047558
  %v145 = vsel %vm144, %v143, %v140
  %146 = vrot.lane.b32.xlu0 %v145, 80
  %v147 = vpop.permute.xlu0 %146
  %vm148 = vcmask 720512
  %149 = vst.msk [vmem:[%s1] sm:$0xff] %vm148, %v147
  %s150 = scalar_lea.vmem %s0, 9
  %s151 = smov 3
  %v152 = vld [vmem:[%s150] ss:$16 sm:%s151]
  %s153 = scalar_lea.vmem %s0, 9
  %s154 = smov 12
  %v155 = vld [vmem:[%s153] ss:$16 sm:%s154]
  %vm156 = vcmask 1043458
  %v157 = vsel %vm156, %v155, %v152
  %s158 = scalar_lea.vmem %s0, 9
  %s159 = smov 48
  %v160 = vld [vmem:[%s158] ss:$16 sm:%s159]
  %vm161 = vcmask 1045508
  %v162 = vsel %vm161, %v160, %v157
  %s163 = scalar_lea.vmem %s0, 9
  %s164 = smov 192
  %v165 = vld [vmem:[%s163] ss:$16 sm:%s164]
  %vm166 = vcmask 1047558
  %v167 = vsel %vm166, %v165, %v162
  %168 = vrot.lane.b32.xlu0 %v167, 72
  %v169 = vpop.permute.xlu0 %168
  %vm170 = vcmask 654912
  %171 = vst.msk [vmem:[%s1] sm:$0xff] %vm170, %v169
  %s172 = scalar_lea.vmem %s0, 8
  %s173 = smov 3
  %v174 = vld [vmem:[%s172] ss:$16 sm:%s173]
  %s175 = scalar_lea.vmem %s0, 8
  %s176 = smov 12
  %v177 = vld [vmem:[%s175] ss:$16 sm:%s176]
  %vm178 = vcmask 1043458
  %v179 = vsel %vm178, %v177, %v174
  %s180 = scalar_lea.vmem %s0, 8
  %s181 = smov 48
  %v182 = vld [vmem:[%s180] ss:$16 sm:%s181]
  %vm183 = vcmask 1045508
  %v184 = vsel %vm183, %v182, %v179
  %s185 = scalar_lea.vmem %s0, 8
  %s186 = smov 192
  %v187 = vld [vmem:[%s185] ss:$16 sm:%s186]
  %vm188 = vcmask 1047558
  %v189 = vsel %vm188, %v187, %v184
  %190 = vrot.lane.b32.xlu0 %v189, 64
  %v191 = vpop.permute.xlu0 %190
  %vm192 = vcmask 589312
  %193 = vst.msk [vmem:[%s1] sm:$0xff] %vm192, %v191
  %s194 = scalar_lea.vmem %s0, 7
  %s195 = smov 3
  %v196 = vld [vmem:[%s194] ss:$16 sm:%s195]
  %s197 = scalar_lea.vmem %s0, 7
  %s198 = smov 12
  %v199 = vld [vmem:[%s197] ss:$16 sm:%s198]
  %vm200 = vcmask 1043458
  %v201 = vsel %vm200, %v199, %v196
  %s202 = scalar_lea.vmem %s0, 7
  %s203 = smov 48
  %v204 = vld [vmem:[%s202] ss:$16 sm:%s203]
  %vm205 = vcmask 1045508
  %v206 = vsel %vm205, %v204, %v201
  %s207 = scalar_lea.vmem %s0, 7
  %s208 = smov 192
  %v209 = vld [vmem:[%s207] ss:$16 sm:%s208]
  %vm210 = vcmask 1047558
  %v211 = vsel %vm210, %v209, %v206
  %212 = vrot.lane.b32.xlu0 %v211, 56
  %v213 = vpop.permute.xlu0 %212
  %vm214 = vcmask 523712
  %215 = vst.msk [vmem:[%s1] sm:$0xff] %vm214, %v213
  %s216 = scalar_lea.vmem %s0, 6
  %s217 = smov 3
  %v218 = vld [vmem:[%s216] ss:$16 sm:%s217]
  %s219 = scalar_lea.vmem %s0, 6
  %s220 = smov 12
  %v221 = vld [vmem:[%s219] ss:$16 sm:%s220]
  %vm222 = vcmask 1043458
  %v223 = vsel %vm222, %v221, %v218
  %s224 = scalar_lea.vmem %s0, 6
  %s225 = smov 48
  %v226 = vld [vmem:[%s224] ss:$16 sm:%s225]
  %vm227 = vcmask 1045508
  %v228 = vsel %vm227, %v226, %v223
  %s229 = scalar_lea.vmem %s0, 6
  %s230 = smov 192
  %v231 = vld [vmem:[%s229] ss:$16 sm:%s230]
  %vm232 = vcmask 1047558
  %v233 = vsel %vm232, %v231, %v228
  %234 = vrot.lane.b32.xlu0 %v233, 48
  %v235 = vpop.permute.xlu0 %234
  %vm236 = vcmask 458112
  %237 = vst.msk [vmem:[%s1] sm:$0xff] %vm236, %v235
  %s238 = scalar_lea.vmem %s0, 5
  %s239 = smov 3
  %v240 = vld [vmem:[%s238] ss:$16 sm:%s239]
  %s241 = scalar_lea.vmem %s0, 5
  %s242 = smov 12
  %v243 = vld [vmem:[%s241] ss:$16 sm:%s242]
  %vm244 = vcmask 1043458
  %v245 = vsel %vm244, %v243, %v240
  %s246 = scalar_lea.vmem %s0, 5
  %s247 = smov 48
  %v248 = vld [vmem:[%s246] ss:$16 sm:%s247]
  %vm249 = vcmask 1045508
  %v250 = vsel %vm249, %v248, %v245
  %s251 = scalar_lea.vmem %s0, 5
  %s252 = smov 192
  %v253 = vld [vmem:[%s251] ss:$16 sm:%s252]
  %vm254 = vcmask 1047558
  %v255 = vsel %vm254, %v253, %v250
  %256 = vrot.lane.b32.xlu0 %v255, 40
  %v257 = vpop.permute.xlu0 %256
  %vm258 = vcmask 392512
  %259 = vst.msk [vmem:[%s1] sm:$0xff] %vm258, %v257
  %s260 = scalar_lea.vmem %s0, 4
  %s261 = smov 3
  %v262 = vld [vmem:[%s260] ss:$16 sm:%s261]
  %s263 = scalar_lea.vmem %s0, 4
  %s264 = smov 12
  %v265 = vld [vmem:[%s263] ss:$16 sm:%s264]
  %vm266 = vcmask 1043458
  %v267 = vsel %vm266, %v265, %v262
  %s268 = scalar_lea.vmem %s0, 4
  %s269 = smov 48
  %v270 = vld [vmem:[%s268] ss:$16 sm:%s269]
  %vm271 = vcmask 1045508
  %v272 = vsel %vm271, %v270, %v267
  %s273 = scalar_lea.vmem %s0, 4
  %s274 = smov 192
  %v275 = vld [vmem:[%s273] ss:$16 sm:%s274]
  %vm276 = vcmask 1047558
  %v277 = vsel %vm276, %v275, %v272
  %278 = vrot.lane.b32.xlu0 %v277, 32
  %v279 = vpop.permute.xlu0 %278
  %vm280 = vcmask 326912
  %281 = vst.msk [vmem:[%s1] sm:$0xff] %vm280, %v279
  %s282 = scalar_lea.vmem %s0, 3
  %s283 = smov 3
  %v284 = vld [vmem:[%s282] ss:$16 sm:%s283]
  %s285 = scalar_lea.vmem %s0, 3
  %s286 = smov 12
  %v287 = vld [vmem:[%s285] ss:$16 sm:%s286]
  %vm288 = vcmask 1043458
  %v289 = vsel %vm288, %v287, %v284
  %s290 = scalar_lea.vmem %s0, 3
  %s291 = smov 48
  %v292 = vld [vmem:[%s290] ss:$16 sm:%s291]
  %vm293 = vcmask 1045508
  %v294 = vsel %vm293, %v292, %v289
  %s295 = scalar_lea.vmem %s0, 3
  %s296 = smov 192
  %v297 = vld [vmem:[%s295] ss:$16 sm:%s296]
  %vm298 = vcmask 1047558
  %v299 = vsel %vm298, %v297, %v294
  %300 = vrot.lane.b32.xlu0 %v299, 24
  %v301 = vpop.permute.xlu0 %300
  %vm302 = vcmask 261312
  %303 = vst.msk [vmem:[%s1] sm:$0xff] %vm302, %v301
  %s304 = scalar_lea.vmem %s0, 2
  %s305 = smov 3
  %v306 = vld [vmem:[%s304] ss:$16 sm:%s305]
  %s307 = scalar_lea.vmem %s0, 2
  %s308 = smov 12
  %v309 = vld [vmem:[%s307] ss:$16 sm:%s308]
  %vm310 = vcmask 1043458
  %v311 = vsel %vm310, %v309, %v306
  %s312 = scalar_lea.vmem %s0, 2
  %s313 = smov 48
  %v314 = vld [vmem:[%s312] ss:$16 sm:%s313]
  %vm315 = vcmask 1045508
  %v316 = vsel %vm315, %v314, %v311
  %s317 = scalar_lea.vmem %s0, 2
  %s318 = smov 192
  %v319 = vld [vmem:[%s317] ss:$16 sm:%s318]
  %vm320 = vcmask 1047558
  %v321 = vsel %vm320, %v319, %v316
  %322 = vrot.lane.b32.xlu0 %v321, 16
  %v323 = vpop.permute.xlu0 %322
  %vm324 = vcmask 195712
  %325 = vst.msk [vmem:[%s1] sm:$0xff] %vm324, %v323
  %s326 = scalar_lea.vmem %s0, 1
  %s327 = smov 3
  %v328 = vld [vmem:[%s326] ss:$16 sm:%s327]
  %s329 = scalar_lea.vmem %s0, 1
  %s330 = smov 12
  %v331 = vld [vmem:[%s329] ss:$16 sm:%s330]
  %vm332 = vcmask 1043458
  %v333 = vsel %vm332, %v331, %v328
  %s334 = scalar_lea.vmem %s0, 1
  %s335 = smov 48
  %v336 = vld [vmem:[%s334] ss:$16 sm:%s335]
  %vm337 = vcmask 1045508
  %v338 = vsel %vm337, %v336, %v333
  %s339 = scalar_lea.vmem %s0, 1
  %s340 = smov 192
  %v341 = vld [vmem:[%s339] ss:$16 sm:%s340]
  %vm342 = vcmask 1047558
  %v343 = vsel %vm342, %v341, %v338
  %344 = vrot.lane.b32.xlu0 %v343, 8
  %v345 = vpop.permute.xlu0 %344
  %vm346 = vcmask 130112
  %347 = vst.msk [vmem:[%s1] sm:$0xff] %vm346, %v345

// kernel: residual_block_forward.1
$region0: #{residual_block_forward.1}
  #allocation0 [shape = 'u32[]', space=smem, size = 0x4, offset = 0x4, fixed_abs, tag = 'smem constant byte address 0x4 - core index']
  #allocation1 [shape = 'u32[144,128]{1,0:T(1,128)}', space=vmem, size = 0x12000, scoped, tag = 'internal scratch']
  #allocation2 [shape = 'f32[2,18,128]{2,1,0:T(8,128)}', space=vmem, size = 0x6000, scoped, tag = 'scratch operand']
  %s0 = inlined_call_operand.vmem [shape: f32[2,18,128], index: 0, kind: input, shape index: {}]
  %s1 = inlined_call_operand.vmem [shape: bf16[3,128,128], index: 1, kind: input, shape index: {}]
  %s2 = inlined_call_operand.vmem [shape: bf16[3,128,128], index: 2, kind: input, shape index: {}]
  %s3 = inlined_call_operand.vmem [shape: f32[128,8], index: 3, kind: input, shape index: {}]
  %s4 = inlined_call_operand.vmem [shape: f32[8,128], index: 4, kind: input, shape index: {}]
  %s5 = inlined_call_operand.vmem [shape: f32[1,8], index: 5, kind: input, shape index: {}]
  %s6 = inlined_call_operand.vmem [shape: f32[1,8], index: 6, kind: input, shape index: {}]
  %s7 = inlined_call_operand.vmem [shape: f32[1,8], index: 7, kind: input, shape index: {}]
  %s8 = inlined_call_operand.vmem [shape: f32[1,8], index: 8, kind: input, shape index: {}]
  %s9 = inlined_call_operand.vmem [shape: f32[32,128], index: 9, kind: output, shape index: {}]
  %s10 = sld [smem:[#allocation0]]
  $region46: #{residual_block_forward.1} parent=0
    _
  %s12 = ssub.s32 1, %s10
  %s13 = scalar_select 0, %s12, %s10
  // Predicated region
  $region2: #{residual_block_forward.1} parent=0 // pred_check
    _
  $region3: #{residual_block_forward.1} parent=0 // pred_check_branch
    %15 = sbr.rel (0) target = $region5
  $region4: #{residual_block_forward.1} parent=0 // pred_region
    _
  $region5: #{residual_block_forward.1} parent=0 // pred_fallthru
    _
  // Predicated region
  $region6: #{residual_block_forward.1} parent=0 // pred_check
    _
  $region7: #{residual_block_forward.1} parent=0 // pred_check_branch
    %17 = sbr.rel (0) target = $region9
  $region8: #{residual_block_forward.1} parent=0 // pred_region
    _
  $region9: #{residual_block_forward.1} parent=0 // pred_fallthru
    _
  // Predicated region
  $region10: #{residual_block_forward.1} parent=0 // pred_check
    _
  $region11: #{residual_block_forward.1} parent=0 // pred_check_branch
    %19 = sbr.rel (0) target = $region13
  $region12: #{residual_block_forward.1} parent=0 // pred_region
    _
  $region13: #{residual_block_forward.1} parent=0 // pred_fallthru
    _
  // Predicated region
  $region14: #{residual_block_forward.1} parent=0 // pred_check
    _
  $region15: #{residual_block_forward.1} parent=0 // pred_check_branch
    %21 = sbr.rel (0) target = $region17
  $region16: #{residual_block_forward.1} parent=0 // pred_region
    _
  $region17: #{residual_block_forward.1} parent=0 // pred_fallthru
    _
  // Predicated region
  $region18: #{residual_block_forward.1} parent=0 // pred_check
    _
  $region19: #{residual_block_forward.1} parent=0 // pred_check_branch
    %23 = sbr.rel (0) target = $region21
  $region20: #{residual_block_forward.1} parent=0 // pred_region
    _
  $region21: #{residual_block_forward.1} parent=0 // pred_fallthru
    _
  // Predicated region
  $region22: #{residual_block_forward.1} parent=0 // pred_check
    _
  $region23: #{residual_block_forward.1} parent=0 // pred_check_branch
    %25 = sbr.rel (0) target = $region25
  $region24: #{residual_block_forward.1} parent=0 // pred_region
    _
  $region25: #{residual_block_forward.1} parent=0 // pred_fallthru
    _
  // Predicated region
  $region26: #{residual_block_forward.1} parent=0 // pred_check
    _
  $region27: #{residual_block_forward.1} parent=0 // pred_check_branch
    %27 = sbr.rel (0) target = $region29
  $region28: #{residual_block_forward.1} parent=0 // pred_region
    _
  $region29: #{residual_block_forward.1} parent=0 // pred_fallthru
    _
  // Predicated region
  $region30: #{residual_block_forward.1} parent=0 // pred_check
    _
  $region31: #{residual_block_forward.1} parent=0 // pred_check_branch
    %29 = sbr.rel (0) target = $region33
  $region32: #{residual_block_forward.1} parent=0 // pred_region
    _
  $region33: #{residual_block_forward.1} parent=0 // pred_fallthru
    _
  // Predicated region
  $region34: #{residual_block_forward.1} parent=0 // pred_check
    _
  $region35: #{residual_block_forward.1} parent=0 // pred_check_branch
    %31 = sbr.rel (0) target = $region37
  $region36: #{residual_block_forward.1} parent=0 // pred_region
    _
  $region37: #{residual_block_forward.1} parent=0 // pred_fallthru
    _
  %v33 = vld [vmem:[%s0 + $0x1] sm:$0xff]
  %v34 = vld [vmem:[%s0 + $0x9] sm:$0xff]
  %v35 = vld [vmem:[%s0 + $0x19] sm:$0xff]
  %v36 = vld [vmem:[%s0 + $0x21] sm:$0xff]
  %v37 = vld [vmem:[%s0] sm:$0xff]
  %v38 = vld [vmem:[%s0 + $0x8] sm:$0xff]
  %v39 = vld [vmem:[%s0 + $0x18] sm:$0xff]
  %v40 = vld [vmem:[%s0 + $0x20] sm:$0xff]
  %v41 = vpack.c.bf16 %v38, %v37
  %v42 = vpack.c.bf16 %v40, %v39
  %v43 = vpack.c.bf16 %v34, %v33
  %v44 = vpack.c.bf16 %v36, %v35
  %v45 = vld [vmem:[%s0 + $0x2] sm:$0xff]
  %v46 = vld [vmem:[%s0 + $0xa] sm:$0xff]
  %v47 = vld [vmem:[%s0 + $0x1a] sm:$0xff]
  %v48 = vld [vmem:[%s0 + $0x22] sm:$0xff]
  %v49 = vpack.c.bf16 %v46, %v45
  %v50 = vpack.c.bf16 %v48, %v47
  %v51 = vld [vmem:[%s1] sm:$0xf]
  %v52 = vld [vmem:[%s1 + $0x4] sm:$0xf]
  %v53 = vld [vmem:[%s1 + $0x8] sm:$0xf]
  %v54 = vld [vmem:[%s1 + $0xc] sm:$0xf]
  %v55 = vld [vmem:[%s1 + $0x10] sm:$0xf]
  %v56 = vld [vmem:[%s1 + $0x14] sm:$0xf]
  %v57 = vld [vmem:[%s1 + $0x18] sm:$0xf]
  %v58 = vld [vmem:[%s1 + $0x1c] sm:$0xf]
  %v59 = vld [vmem:[%s1 + $0x20] sm:$0xf]
  %v60 = vld [vmem:[%s1 + $0x24] sm:$0xf]
  %v61 = vld [vmem:[%s1 + $0x28] sm:$0xf]
  %v62 = vld [vmem:[%s1 + $0x2c] sm:$0xf]
  %v63 = vld [vmem:[%s1 + $0x30] sm:$0xf]
  %v64 = vld [vmem:[%s1 + $0x34] sm:$0xf]
  %v65 = vld [vmem:[%s1 + $0x38] sm:$0xf]
  %v66 = vld [vmem:[%s1 + $0x3c] sm:$0xf]
  %s67 = scalar_lea.vmem %s1, 64
  %v68 = vld [vmem:[%s67] sm:$0xf]
  %v69 = vld [vmem:[%s67 + $0x4] sm:$0xf]
  %v70 = vld [vmem:[%s67 + $0x8] sm:$0xf]
  %v71 = vld [vmem:[%s67 + $0xc] sm:$0xf]
  %v72 = vld [vmem:[%s67 + $0x10] sm:$0xf]
  %v73 = vld [vmem:[%s67 + $0x14] sm:$0xf]
  %v74 = vld [vmem:[%s67 + $0x18] sm:$0xf]
  %v75 = vld [vmem:[%s67 + $0x1c] sm:$0xf]
  %v76 = vld [vmem:[%s67 + $0x20] sm:$0xf]
  %v77 = vld [vmem:[%s67 + $0x24] sm:$0xf]
  %v78 = vld [vmem:[%s67 + $0x28] sm:$0xf]
  %v79 = vld [vmem:[%s67 + $0x2c] sm:$0xf]
  %v80 = vld [vmem:[%s67 + $0x30] sm:$0xf]
  %v81 = vld [vmem:[%s67 + $0x34] sm:$0xf]
  %v82 = vld [vmem:[%s67 + $0x38] sm:$0xf]
  %v83 = vld [vmem:[%s67 + $0x3c] sm:$0xf]
  %v100 = vunpack.c.l.b16 %v68
  %v101 = vunpack.c.l.b16 %v69
  %v102 = vunpack.c.l.b16 %v70
  %v103 = vunpack.c.l.b16 %v71
  %v104 = vunpack.c.l.b16 %v72
  %v105 = vunpack.c.l.b16 %v73
  %v106 = vunpack.c.l.b16 %v74
  %v107 = vunpack.c.l.b16 %v75
  %v108 = vunpack.c.l.b16 %v76
  %v109 = vunpack.c.l.b16 %v77
  %v110 = vunpack.c.l.b16 %v78
  %v111 = vunpack.c.l.b16 %v79
  %v112 = vunpack.c.l.b16 %v80
  %v113 = vunpack.c.l.b16 %v81
  %v114 = vunpack.c.l.b16 %v82
  %v115 = vunpack.c.l.b16 %v83
  %v116 = vpack.c.b16 %v101, %v100
  %v117 = vpack.c.b16 %v103, %v102
  %v118 = vpack.c.b16 %v105, %v104
  %v119 = vpack.c.b16 %v107, %v106
  %v120 = vpack.c.b16 %v109, %v108
  %v121 = vpack.c.b16 %v111, %v110
  %v122 = vpack.c.b16 %v113, %v112
  %v123 = vpack.c.b16 %v115, %v114
  %132 = vmatprep.subr.bf16.mxu0 0
  %133 = vmatpush1.bf16.msra.mxu0 %v116
  %134 = vmatprep.subr.bf16.mxu0 0
  %135 = vmatpush1.bf16.msra.mxu0 %v117
  %136 = vmatprep.subr.bf16.mxu0 0
  %137 = vmatpush1.bf16.msra.mxu0 %v118
  %138 = vmatprep.subr.bf16.mxu0 0
  %139 = vmatpush1.bf16.msra.mxu0 %v119
  %140 = vmatprep.subr.bf16.mxu0 0
  %141 = vmatpush1.bf16.msra.mxu0 %v120
  %142 = vmatprep.subr.bf16.mxu0 0
  %143 = vmatpush1.bf16.msra.mxu0 %v121
  %144 = vmatprep.subr.bf16.mxu0 0
  %145 = vmatpush1.bf16.msra.mxu0 %v122
  %146 = vmatprep.subr.bf16.mxu0 0
  %147 = vmatpush1.bf16.msra.mxu0 %v123
  %148 = vmatprep.subr.bf16.mxu0 0
  %149 = vmatpush1.bf16.msra.mxu0 0
  %150 = vmatprep.subr.bf16.mxu0 0
  %151 = vmatpush1.bf16.msra.mxu0 0
  %152 = vmatprep.subr.bf16.mxu0 0
  %153 = vmatpush1.bf16.msra.mxu0 0
  %154 = vmatprep.subr.bf16.mxu0 0
  %155 = vmatpush1.bf16.msra.mxu0 0
  %156 = vmatprep.subr.bf16.mxu0 0
  %157 = vmatpush1.bf16.msra.mxu0 0
  %158 = vmatprep.subr.bf16.mxu0 0
  %159 = vmatpush1.bf16.msra.mxu0 0
  %160 = vmatprep.subr.bf16.mxu0 0
  %161 = vmatpush1.bf16.msra.mxu0 0
  %162 = vmatprep.subr.bf16.mxu0 0
  %163 = vmatpush1.bf16.msra.mxu0 0
  %164 = vmatprep.mubr.bf16.mxu0 0
  %165 = vmatmul.mubr.bf16.gmra.mrb[0].mxu0 %v43
  %v166 = vpop.f32.mrb[0].mxu0
  %v167 = vadd.f32 0.0, %v166
  %v168 = vpop.f32.mrb[0].mxu0
  %v169 = vpop.f32.mrb[0].mxu0
  %v170 = vadd.f32 0.0, %v169
  %v171 = vpop.f32.mrb[0].mxu0
  %172 = vmatprep.mubr.bf16.mxu0 0
  %173 = vmatmul.mubr.bf16.gmra.mrb[0].mxu0 %v44
  %v174 = vpop.f32.mrb[0].mxu0
  %v175 = vadd.f32 0.0, %v174
  %v176 = vpop.f32.mrb[0].mxu0
  %v177 = vpop.f32.mrb[0].mxu0
  %v178 = vadd.f32 0.0, %v177
  %v179 = vpop.f32.mrb[0].mxu0
  %180 = vdwg.mxu0
  %v197 = vunpack.c.l.b16 %v51
  %v198 = vunpack.c.l.b16 %v52
  %v199 = vunpack.c.l.b16 %v53
  %v200 = vunpack.c.l.b16 %v54
  %v201 = vunpack.c.l.b16 %v55
  %v202 = vunpack.c.l.b16 %v56
  %v203 = vunpack.c.l.b16 %v57
  %v204 = vunpack.c.l.b16 %v58
  %v205 = vunpack.c.l.b16 %v59
  %v206 = vunpack.c.l.b16 %v60
  %v207 = vunpack.c.l.b16 %v61
  %v208 = vunpack.c.l.b16 %v62
  %v209 = vunpack.c.l.b16 %v63
  %v210 = vunpack.c.l.b16 %v64
  %v211 = vunpack.c.l.b16 %v65
  %v212 = vunpack.c.l.b16 %v66
  %v213 = vpack.c.b16 %v198, %v197
  %v214 = vpack.c.b16 %v200, %v199
  %v215 = vpack.c.b16 %v202, %v201
  %v216 = vpack.c.b16 %v204, %v203
  %v217 = vpack.c.b16 %v206, %v205
  %v218 = vpack.c.b16 %v208, %v207
  %v219 = vpack.c.b16 %v210, %v209
  %v220 = vpack.c.b16 %v212, %v211
  %229 = vmatprep.subr.bf16.mxu0 0
  %230 = vmatpush1.bf16.msra.mxu0 %v213
  %231 = vmatprep.subr.bf16.mxu0 0
  %232 = vmatpush1.bf16.msra.mxu0 %v214
  %233 = vmatprep.subr.bf16.mxu0 0
  %234 = vmatpush1.bf16.msra.mxu0 %v215
  %235 = vmatprep.subr.bf16.mxu0 0
  %236 = vmatpush1.bf16.msra.mxu0 %v216
  %237 = vmatprep.subr.bf16.mxu0 0
  %238 = vmatpush1.bf16.msra.mxu0 %v217
  %239 = vmatprep.subr.bf16.mxu0 0
  %240 = vmatpush1.bf16.msra.mxu0 %v218
  %241 = vmatprep.subr.bf16.mxu0 0
  %242 = vmatpush1.bf16.msra.mxu0 %v219
  %243 = vmatprep.subr.bf16.mxu0 0
  %244 = vmatpush1.bf16.msra.mxu0 %v220
  %245 = vmatprep.subr.bf16.mxu0 0
  %246 = vmatpush1.bf16.msra.mxu0 0
  %247 = vmatprep.subr.bf16.mxu0 0
  %248 = vmatpush1.bf16.msra.mxu0 0
  %249 = vmatprep.subr.bf16.mxu0 0
  %250 = vmatpush1.bf16.msra.mxu0 0
  %251 = vmatprep.subr.bf16.mxu0 0
  %252 = vmatpush1.bf16.msra.mxu0 0
  %253 = vmatprep.subr.bf16.mxu0 0
  %254 = vmatpush1.bf16.msra.mxu0 0
  %255 = vmatprep.subr.bf16.mxu0 0
  %256 = vmatpush1.bf16.msra.mxu0 0
  %257 = vmatprep.subr.bf16.mxu0 0
  %258 = vmatpush1.bf16.msra.mxu0 0
  %259 = vmatprep.subr.bf16.mxu0 0
  %260 = vmatpush1.bf16.msra.mxu0 0
  %261 = vmatprep.mubr.bf16.mxu0 0
  %262 = vmatmul.mubr.bf16.gmra.mrb[0].mxu0 %v41
  %v263 = vpop.f32.mrb[0].mxu0
  %v264 = vadd.f32 %v167, %v263
  %v265 = vpop.f32.mrb[0].mxu0
  %v266 = vpop.f32.mrb[0].mxu0
  %v267 = vadd.f32 %v170, %v266
  %v268 = vpop.f32.mrb[0].mxu0
  %269 = vmatprep.mubr.bf16.mxu0 0
  %270 = vmatmul.mubr.bf16.gmra.mrb[0].mxu0 %v42
  %v271 = vpop.f32.mrb[0].mxu0
  %v272 = vadd.f32 %v175, %v271
  %v273 = vpop.f32.mrb[0].mxu0
  %v274 = vpop.f32.mrb[0].mxu0
  %v275 = vadd.f32 %v178, %v274
  %v276 = vpop.f32.mrb[0].mxu0
  %277 = vdwg.mxu0
  %s278 = scalar_lea.vmem %s1, 128
  %v279 = vld [vmem:[%s278] sm:$0xf]
  %v280 = vld [vmem:[%s278 + $0x4] sm:$0xf]
  %v281 = vld [vmem:[%s278 + $0x8] sm:$0xf]
  %v282 = vld [vmem:[%s278 + $0xc] sm:$0xf]
  %v283 = vld [vmem:[%s278 + $0x10] sm:$0xf]
  %v284 = vld [vmem:[%s278 + $0x14] sm:$0xf]
  %v285 = vld [vmem:[%s278 + $0x18] sm:$0xf]
  %v286 = vld [vmem:[%s278 + $0x1c] sm:$0xf]
  %v287 = vld [vmem:[%s278 + $0x20] sm:$0xf]
  %v288 = vld [vmem:[%s278 + $0x24] sm:$0xf]
  %v289 = vld [vmem:[%s278 + $0x28] sm:$0xf]
  %v290 = vld [vmem:[%s278 + $0x2c] sm:$0xf]
  %v291 = vld [vmem:[%s278 + $0x30] sm:$0xf]
  %v292 = vld [vmem:[%s278 + $0x34] sm:$0xf]
  %v293 = vld [vmem:[%s278 + $0x38] sm:$0xf]
  %v294 = vld [vmem:[%s278 + $0x3c] sm:$0xf]
  %v311 = vunpack.c.l.b16 %v279
  %v312 = vunpack.c.l.b16 %v280
  %v313 = vunpack.c.l.b16 %v281
  %v314 = vunpack.c.l.b16 %v282
  %v315 = vunpack.c.l.b16 %v283
  %v316 = vunpack.c.l.b16 %v284
  %v317 = vunpack.c.l.b16 %v285
  %v318 = vunpack.c.l.b16 %v286
  %v319 = vunpack.c.l.b16 %v287
  %v320 = vunpack.c.l.b16 %v288
  %v321 = vunpack.c.l.b16 %v289
  %v322 = vunpack.c.l.b16 %v290
  %v323 = vunpack.c.l.b16 %v291
  %v324 = vunpack.c.l.b16 %v292
  %v325 = vunpack.c.l.b16 %v293
  %v326 = vunpack.c.l.b16 %v294
  %v327 = vpack.c.b16 %v312, %v311
  %v328 = vpack.c.b16 %v314, %v313
  %v329 = vpack.c.b16 %v316, %v315
  %v330 = vpack.c.b16 %v318, %v317
  %v331 = vpack.c.b16 %v320, %v319
  %v332 = vpack.c.b16 %v322, %v321
  %v333 = vpack.c.b16 %v324, %v323
  %v334 = vpack.c.b16 %v326, %v325
  %343 = vmatprep.subr.bf16.mxu0 0
  %344 = vmatpush1.bf16.msra.mxu0 %v327
  %345 = vmatprep.subr.bf16.mxu0 0
  %346 = vmatpush1.bf16.msra.mxu0 %v328
  %347 = vmatprep.subr.bf16.mxu0 0
  %348 = vmatpush1.bf16.msra.mxu0 %v329
  %349 = vmatprep.subr.bf16.mxu0 0
  %350 = vmatpush1.bf16.msra.mxu0 %v330
  %351 = vmatprep.subr.bf16.mxu0 0
  %352 = vmatpush1.bf16.msra.mxu0 %v331
  %353 = vmatprep.subr.bf16.mxu0 0
  %354 = vmatpush1.bf16.msra.mxu0 %v332
  %355 = vmatprep.subr.bf16.mxu0 0
  %356 = vmatpush1.bf16.msra.mxu0 %v333
  %357 = vmatprep.subr.bf16.mxu0 0
  %358 = vmatpush1.bf16.msra.mxu0 %v334
  %359 = vmatprep.subr.bf16.mxu0 0
  %360 = vmatpush1.bf16.msra.mxu0 0
  %361 = vmatprep.subr.bf16.mxu0 0
  %362 = vmatpush1.bf16.msra.mxu0 0
  %363 = vmatprep.subr.bf16.mxu0 0
  %364 = vmatpush1.bf16.msra.mxu0 0
  %365 = vmatprep.subr.bf16.mxu0 0
  %366 = vmatpush1.bf16.msra.mxu0 0
  %367 = vmatprep.subr.bf16.mxu0 0
  %368 = vmatpush1.bf16.msra.mxu0 0
  %369 = vmatprep.subr.bf16.mxu0 0
  %370 = vmatpush1.bf16.msra.mxu0 0
  %371 = vmatprep.subr.bf16.mxu0 0
  %372 = vmatpush1.bf16.msra.mxu0 0
  %373 = vmatprep.subr.bf16.mxu0 0
  %374 = vmatpush1.bf16.msra.mxu0 0
  %375 = vmatprep.mubr.bf16.mxu0 0
  %376 = vmatmul.mubr.bf16.gmra.mrb[0].mxu0 %v49
  %v377 = vpop.f32.mrb[0].mxu0
  %v378 = vadd.f32 0.0, %v377
  %v379 = vpop.f32.mrb[0].mxu0
  %v380 = vpop.f32.mrb[0].mxu0
  %v381 = vadd.f32 0.0, %v380
  %v382 = vpop.f32.mrb[0].mxu0
  %383 = vmatprep.mubr.bf16.mxu0 0
  %384 = vmatmul.mubr.bf16.gmra.mrb[0].mxu0 %v50
  %v385 = vpop.f32.mrb[0].mxu0
  %v386 = vadd.f32 0.0, %v385
  %v387 = vpop.f32.mrb[0].mxu0
  %v388 = vpop.f32.mrb[0].mxu0
  %v389 = vadd.f32 0.0, %v388
  %v390 = vpop.f32.mrb[0].mxu0
  %391 = vdwg.mxu0
  %v392 = vadd.f32 %v264, %v378
  %v393 = vadd.f32 %v267, %v381
  %v394 = vadd.f32 %v272, %v386
  %v395 = vadd.f32 %v275, %v389
  %v396 = vld [vmem:[%s5] sm:$0x1]
  %v397 = vld [vmem:[%s6] sm:$0x1]
  %v398 = vadd.f32 %v392, %v393
  %v399 = vadd.f32 %v398, %v394
  %v400 = vadd.f32 %v399, %v395
  %v401 = vrot.slane %v400, 4
  %v402 = vadd.f32 %v400, %v401
  %v403 = vrot.slane %v402, 2
  %v404 = vadd.f32 %v402, %v403
  %v405 = vrot.slane %v404, 1
  %v406 = vadd.f32 %v404, %v405
  %v407 = vmul.f32 %v392, %v392
  %v408 = vmul.f32 %v393, %v393
  %v409 = vmul.f32 %v394, %v394
  %v410 = vmul.f32 %v395, %v395
  %v411 = vadd.f32 %v407, %v408
  %v412 = vadd.f32 %v411, %v409
  %v413 = vadd.f32 %v412, %v410
  %v414 = vrot.slane %v413, 4
  %v415 = vadd.f32 %v413, %v414
  %v416 = vrot.slane %v415, 2
  %v417 = vadd.f32 %v415, %v416
  %v418 = vrot.slane %v417, 1
  %v419 = vadd.f32 %v417, %v418
  %v420 = vld [vmem:[%s3] sm:$0xff]
  %v421 = vld [vmem:[%s3 + $0x8] sm:$0xff]
  %v422 = vld [vmem:[%s3 + $0x10] sm:$0xff]
  %v423 = vld [vmem:[%s3 + $0x18] sm:$0xff]
  %v424 = vld [vmem:[%s3 + $0x20] sm:$0xff]
  %v425 = vld [vmem:[%s3 + $0x28] sm:$0xff]
  %v426 = vld [vmem:[%s3 + $0x30] sm:$0xff]
  %v427 = vld [vmem:[%s3 + $0x38] sm:$0xff]
  %v428 = vld [vmem:[%s3 + $0x40] sm:$0xff]
  %v429 = vld [vmem:[%s3 + $0x48] sm:$0xff]
  %v430 = vld [vmem:[%s3 + $0x50] sm:$0xff]
  %v431 = vld [vmem:[%s3 + $0x58] sm:$0xff]
  %v432 = vld [vmem:[%s3 + $0x60] sm:$0xff]
  %v433 = vld [vmem:[%s3 + $0x68] sm:$0xff]
  %v434 = vld [vmem:[%s3 + $0x70] sm:$0xff]
  %v435 = vld [vmem:[%s3 + $0x78] sm:$0xff]
  %436 = vmatprep.subr.mxu0 0.0
  %437 = vmatpush1.msra.mxu0 %v420
  %438 = vmatprep.subr.mxu0 0.0
  %439 = vmatpush1.msra.mxu0 %v421
  %440 = vmatprep.subr.mxu0 0.0
  %441 = vmatpush1.msra.mxu0 %v422
  %442 = vmatprep.subr.mxu0 0.0
  %443 = vmatpush1.msra.mxu0 %v423
  %444 = vmatprep.subr.mxu0 0.0
  %445 = vmatpush1.msra.mxu0 %v424
  %446 = vmatprep.subr.mxu0 0.0
  %447 = vmatpush1.msra.mxu0 %v425
  %448 = vmatprep.subr.mxu0 0.0
  %449 = vmatpush1.msra.mxu0 %v426
  %450 = vmatprep.subr.mxu0 0.0
  %451 = vmatpush1.msra.mxu0 %v427
  %452 = vmatprep.subr.mxu0 0.0
  %453 = vmatpush1.msra.mxu0 %v428
  %454 = vmatprep.subr.mxu0 0.0
  %455 = vmatpush1.msra.mxu0 %v429
  %456 = vmatprep.subr.mxu0 0.0
  %457 = vmatpush1.msra.mxu0 %v430
  %458 = vmatprep.subr.mxu0 0.0
  %459 = vmatpush1.msra.mxu0 %v431
  %460 = vmatprep.subr.mxu0 0.0
  %461 = vmatpush1.msra.mxu0 %v432
  %462 = vmatprep.subr.mxu0 0.0
  %463 = vmatpush1.msra.mxu0 %v433
  %464 = vmatprep.subr.mxu0 0.0
  %465 = vmatpush1.msra.mxu0 %v434
  %466 = vmatprep.subr.mxu0 0.0
  %467 = vmatpush1.msra.mxu0 %v435
  %468 = vmatprep.subr.mxu0 0.0
  %469 = vmatpush1.msra.mxu0 0.0
  %470 = vmatprep.subr.mxu0 0.0
  %471 = vmatpush1.msra.mxu0 0.0
  %472 = vmatprep.subr.mxu0 0.0
  %473 = vmatpush1.msra.mxu0 0.0
  %474 = vmatprep.subr.mxu0 0.0
  %475 = vmatpush1.msra.mxu0 0.0
  %476 = vmatprep.subr.mxu0 0.0
  %477 = vmatpush1.msra.mxu0 0.0
  %478 = vmatprep.subr.mxu0 0.0
  %479 = vmatpush1.msra.mxu0 0.0
  %480 = vmatprep.subr.mxu0 0.0
  %481 = vmatpush1.msra.mxu0 0.0
  %482 = vmatprep.subr.mxu0 0.0
  %483 = vmatpush1.msra.mxu0 0.0
  %484 = vmatprep.subr.mxu0 0.0
  %485 = vmatpush1.msra.mxu0 0.0
  %486 = vmatprep.subr.mxu0 0.0
  %487 = vmatpush1.msra.mxu0 0.0
  %488 = vmatprep.subr.mxu0 0.0
  %489 = vmatpush1.msra.mxu0 0.0
  %490 = vmatprep.subr.mxu0 0.0
  %491 = vmatpush1.msra.mxu0 0.0
  %492 = vmatprep.subr.mxu0 0.0
  %493 = vmatpush1.msra.mxu0 0.0
  %494 = vmatprep.subr.mxu0 0.0
  %495 = vmatpush1.msra.mxu0 0.0
  %496 = vmatprep.subr.mxu0 0.0
  %497 = vmatpush1.msra.mxu0 0.0
  %498 = vmatprep.subr.mxu0 0.0
  %499 = vmatpush1.msra.mxu0 0.0
  %500 = vmatprep.mubr.f32.mxu0 0.0
  %501 = vmatmul.mubr.f32.gmra.mrb[0].mxu0 %v406
  %v502 = vpop.f32.mrb[0].mxu0
  %v503 = vadd.f32 0.0, %v502
  %v504 = vpop.f32.mrb[0].mxu0
  %505 = vdwg.mxu0
  %506 = vmatprep.subr.mxu0 0.0
  %507 = vmatpush1.msra.mxu0 %v420
  %508 = vmatprep.subr.mxu0 0.0
  %509 = vmatpush1.msra.mxu0 %v421
  %510 = vmatprep.subr.mxu0 0.0
  %511 = vmatpush1.msra.mxu0 %v422
  %512 = vmatprep.subr.mxu0 0.0
  %513 = vmatpush1.msra.mxu0 %v423
  %514 = vmatprep.subr.mxu0 0.0
  %515 = vmatpush1.msra.mxu0 %v424
  %516 = vmatprep.subr.mxu0 0.0
  %517 = vmatpush1.msra.mxu0 %v425
  %518 = vmatprep.subr.mxu0 0.0
  %519 = vmatpush1.msra.mxu0 %v426
  %520 = vmatprep.subr.mxu0 0.0
  %521 = vmatpush1.msra.mxu0 %v427
  %522 = vmatprep.subr.mxu0 0.0
  %523 = vmatpush1.msra.mxu0 %v428
  %524 = vmatprep.subr.mxu0 0.0
  %525 = vmatpush1.msra.mxu0 %v429
  %526 = vmatprep.subr.mxu0 0.0
  %527 = vmatpush1.msra.mxu0 %v430
  %528 = vmatprep.subr.mxu0 0.0
  %529 = vmatpush1.msra.mxu0 %v431
  %530 = vmatprep.subr.mxu0 0.0
  %531 = vmatpush1.msra.mxu0 %v432
  %532 = vmatprep.subr.mxu0 0.0
  %533 = vmatpush1.msra.mxu0 %v433
  %534 = vmatprep.subr.mxu0 0.0
  %535 = vmatpush1.msra.mxu0 %v434
  %536 = vmatprep.subr.mxu0 0.0
  %537 = vmatpush1.msra.mxu0 %v435
  %538 = vmatprep.subr.mxu0 0.0
  %539 = vmatpush1.msra.mxu0 0.0
  %540 = vmatprep.subr.mxu0 0.0
  %541 = vmatpush1.msra.mxu0 0.0
  %542 = vmatprep.subr.mxu0 0.0
  %543 = vmatpush1.msra.mxu0 0.0
  %544 = vmatprep.subr.mxu0 0.0
  %545 = vmatpush1.msra.mxu0 0.0
  %546 = vmatprep.subr.mxu0 0.0
  %547 = vmatpush1.msra.mxu0 0.0
  %548 = vmatprep.subr.mxu0 0.0
  %549 = vmatpush1.msra.mxu0 0.0
  %550 = vmatprep.subr.mxu0 0.0
  %551 = vmatpush1.msra.mxu0 0.0
  %552 = vmatprep.subr.mxu0 0.0
  %553 = vmatpush1.msra.mxu0 0.0
  %554 = vmatprep.subr.mxu0 0.0
  %555 = vmatpush1.msra.mxu0 0.0
  %556 = vmatprep.subr.mxu0 0.0
  %557 = vmatpush1.msra.mxu0 0.0
  %558 = vmatprep.subr.mxu0 0.0
  %559 = vmatpush1.msra.mxu0 0.0
  %560 = vmatprep.subr.mxu0 0.0
  %561 = vmatpush1.msra.mxu0 0.0
  %562 = vmatprep.subr.mxu0 0.0
  %563 = vmatpush1.msra.mxu0 0.0
  %564 = vmatprep.subr.mxu0 0.0
  %565 = vmatpush1.msra.mxu0 0.0
  %566 = vmatprep.subr.mxu0 0.0
  %567 = vmatpush1.msra.mxu0 0.0
  %568 = vmatprep.subr.mxu0 0.0
  %569 = vmatpush1.msra.mxu0 0.0
  %570 = vmatprep.mubr.f32.mxu0 0.0
  %571 = vmatmul.mubr.f32.gmra.mrb[0].mxu0 %v419
  %v572 = vpop.f32.mrb[0].mxu0
  %v573 = vadd.f32 0.0, %v572
  %v574 = vpop.f32.mrb[0].mxu0
  %575 = vdwg.mxu0
  %v576 = vmul.f32 %v503, 0.001953125
  %v577 = vmul.f32 %v573, 0.001953125
  %v578 = vmul.f32 %v576, %v576
  %v579 = vsub.f32 %v577, %v578
  %v580 = vmax.f32 %v579, 0.0
  %v581 = vadd.f32 %v580, 1e-05
  %v582 = vrsqrt.pop %v581
  %v583 = vmul.f32 %v396, %v582
  %v584 = vmul.f32 %v576, %v583
  %v585 = vsub.f32 %v397, %v584
  %v586 = vld [vmem:[%s4] sm:$0xff]
  %vm587 = vcmask 64512
  %v589 = vsel %vm587, %v583, 0
  %591 = vmatprep.subr.mxu0 0.0
  %592 = vmatpush1.msra.mxu0 %v586
  %593 = vmatprep.subr.mxu0 0.0
  %594 = vmatpush1.msra.mxu0 0.0
  %595 = vmatprep.subr.mxu0 0.0
  %596 = vmatpush1.msra.mxu0 0.0
  %597 = vmatprep.subr.mxu0 0.0
  %598 = vmatpush1.msra.mxu0 0.0
  %599 = vmatprep.subr.mxu0 0.0
  %600 = vmatpush1.msra.mxu0 0.0
  %601 = vmatprep.subr.mxu0 0.0
  %602 = vmatpush1.msra.mxu0 0.0
  %603 = vmatprep.subr.mxu0 0.0
  %604 = vmatpush1.msra.mxu0 0.0
  %605 = vmatprep.subr.mxu0 0.0
  %606 = vmatpush1.msra.mxu0 0.0
  %607 = vmatprep.subr.mxu0 0.0
  %608 = vmatpush1.msra.mxu0 0.0
  %609 = vmatprep.subr.mxu0 0.0
  %610 = vmatpush1.msra.mxu0 0.0
  %611 = vmatprep.subr.mxu0 0.0
  %612 = vmatpush1.msra.mxu0 0.0
  %613 = vmatprep.subr.mxu0 0.0
  %614 = vmatpush1.msra.mxu0 0.0
  %615 = vmatprep.subr.mxu0 0.0
  %616 = vmatpush1.msra.mxu0 0.0
  %617 = vmatprep.subr.mxu0 0.0
  %618 = vmatpush1.msra.mxu0 0.0
  %619 = vmatprep.subr.mxu0 0.0
  %620 = vmatpush1.msra.mxu0 0.0
  %621 = vmatprep.subr.mxu0 0.0
  %622 = vmatpush1.msra.mxu0 0.0
  %623 = vmatprep.subr.mxu0 0.0
  %624 = vmatpush1.msra.mxu0 0.0
  %625 = vmatprep.subr.mxu0 0.0
  %626 = vmatpush1.msra.mxu0 0.0
  %627 = vmatprep.subr.mxu0 0.0
  %628 = vmatpush1.msra.mxu0 0.0
  %629 = vmatprep.subr.mxu0 0.0
  %630 = vmatpush1.msra.mxu0 0.0
  %631 = vmatprep.subr.mxu0 0.0
  %632 = vmatpush1.msra.mxu0 0.0
  %633 = vmatprep.subr.mxu0 0.0
  %634 = vmatpush1.msra.mxu0 0.0
  %635 = vmatprep.subr.mxu0 0.0
  %636 = vmatpush1.msra.mxu0 0.0
  %637 = vmatprep.subr.mxu0 0.0
  %638 = vmatpush1.msra.mxu0 0.0
  %639 = vmatprep.subr.mxu0 0.0
  %640 = vmatpush1.msra.mxu0 0.0
  %641 = vmatprep.subr.mxu0 0.0
  %642 = vmatpush1.msra.mxu0 0.0
  %643 = vmatprep.subr.mxu0 0.0
  %644 = vmatpush1.msra.mxu0 0.0
  %645 = vmatprep.subr.mxu0 0.0
  %646 = vmatpush1.msra.mxu0 0.0
  %647 = vmatprep.subr.mxu0 0.0
  %648 = vmatpush1.msra.mxu0 0.0
  %649 = vmatprep.subr.mxu0 0.0
  %650 = vmatpush1.msra.mxu0 0.0
  %651 = vmatprep.subr.mxu0 0.0
  %652 = vmatpush1.msra.mxu0 0.0
  %653 = vmatprep.subr.mxu0 0.0
  %654 = vmatpush1.msra.mxu0 0.0
  %655 = vmatprep.mubr.f32.mxu0 0.0
  %656 = vmatmul.mubr.f32.gmra.mrb[0].mxu0 %v589
  %v657 = vpop.f32.mrb[0].mxu0
  %v658 = vadd.f32 0.0, %v657
  %v659 = vpop.f32.mrb[0].mxu0
  %660 = vdwg.mxu0
  %v662 = vsel %vm587, %v585, 0
  %664 = vmatprep.subr.mxu0 0.0
  %665 = vmatpush1.msra.mxu0 %v586
  %666 = vmatprep.subr.mxu0 0.0
  %667 = vmatpush1.msra.mxu0 0.0
  %668 = vmatprep.subr.mxu0 0.0
  %669 = vmatpush1.msra.mxu0 0.0
  %670 = vmatprep.subr.mxu0 0.0
  %671 = vmatpush1.msra.mxu0 0.0
  %672 = vmatprep.subr.mxu0 0.0
  %673 = vmatpush1.msra.mxu0 0.0
  %674 = vmatprep.subr.mxu0 0.0
  %675 = vmatpush1.msra.mxu0 0.0
  %676 = vmatprep.subr.mxu0 0.0
  %677 = vmatpush1.msra.mxu0 0.0
  %678 = vmatprep.subr.mxu0 0.0
  %679 = vmatpush1.msra.mxu0 0.0
  %680 = vmatprep.subr.mxu0 0.0
  %681 = vmatpush1.msra.mxu0 0.0
  %682 = vmatprep.subr.mxu0 0.0
  %683 = vmatpush1.msra.mxu0 0.0
  %684 = vmatprep.subr.mxu0 0.0
  %685 = vmatpush1.msra.mxu0 0.0
  %686 = vmatprep.subr.mxu0 0.0
  %687 = vmatpush1.msra.mxu0 0.0
  %688 = vmatprep.subr.mxu0 0.0
  %689 = vmatpush1.msra.mxu0 0.0
  %690 = vmatprep.subr.mxu0 0.0
  %691 = vmatpush1.msra.mxu0 0.0
  %692 = vmatprep.subr.mxu0 0.0
  %693 = vmatpush1.msra.mxu0 0.0
  %694 = vmatprep.subr.mxu0 0.0
  %695 = vmatpush1.msra.mxu0 0.0
  %696 = vmatprep.subr.mxu0 0.0
  %697 = vmatpush1.msra.mxu0 0.0
  %698 = vmatprep.subr.mxu0 0.0
  %699 = vmatpush1.msra.mxu0 0.0
  %700 = vmatprep.subr.mxu0 0.0
  %701 = vmatpush1.msra.mxu0 0.0
  %702 = vmatprep.subr.mxu0 0.0
  %703 = vmatpush1.msra.mxu0 0.0
  %704 = vmatprep.subr.mxu0 0.0
  %705 = vmatpush1.msra.mxu0 0.0
  %706 = vmatprep.subr.mxu0 0.0
  %707 = vmatpush1.msra.mxu0 0.0
  %708 = vmatprep.subr.mxu0 0.0
  %709 = vmatpush1.msra.mxu0 0.0
  %710 = vmatprep.subr.mxu0 0.0
  %711 = vmatpush1.msra.mxu0 0.0
  %712 = vmatprep.subr.mxu0 0.0
  %713 = vmatpush1.msra.mxu0 0.0
  %714 = vmatprep.subr.mxu0 0.0
  %715 = vmatpush1.msra.mxu0 0.0
  %716 = vmatprep.subr.mxu0 0.0
  %717 = vmatpush1.msra.mxu0 0.0
  %718 = vmatprep.subr.mxu0 0.0
  %719 = vmatpush1.msra.mxu0 0.0
  %720 = vmatprep.subr.mxu0 0.0
  %721 = vmatpush1.msra.mxu0 0.0
  %722 = vmatprep.subr.mxu0 0.0
  %723 = vmatpush1.msra.mxu0 0.0
  %724 = vmatprep.subr.mxu0 0.0
  %725 = vmatpush1.msra.mxu0 0.0
  %726 = vmatprep.subr.mxu0 0.0
  %727 = vmatpush1.msra.mxu0 0.0
  %728 = vmatprep.mubr.f32.mxu0 0.0
  %729 = vmatmul.mubr.f32.gmra.mrb[0].mxu0 %v662
  %v730 = vpop.f32.mrb[0].mxu0
  %v731 = vadd.f32 0.0, %v730
  %v732 = vpop.f32.mrb[0].mxu0
  %733 = vdwg.mxu0
  %v734 = vlaneseq
  %v735 = vshrl.u32 %v734, 7
  %v736 = vsub.s32 0, %v735
  %v737 = vrot.slane %v658, %v736
  %v738 = vmul.f32 %v392, %v737
  %v739 = vmul.f32 %v393, %v737
  %v740 = vmul.f32 %v394, %v737
  %v741 = vmul.f32 %v395, %v737
  %v742 = vlaneseq
  %v743 = vshrl.u32 %v742, 7
  %v744 = vsub.s32 0, %v743
  %v745 = vrot.slane %v731, %v744
  %v746 = vadd.f32 %v738, %v745
  %v747 = vadd.f32 %v739, %v745
  %v748 = vadd.f32 %v740, %v745
  %v749 = vadd.f32 %v741, %v745
  %v750 = vmax.f32 %v746, 0.0
  %v751 = vmax.f32 %v747, 0.0
  %v752 = vmax.f32 %v748, 0.0
  %v753 = vmax.f32 %v749, 0.0
  %754 = vst [vmem:[#allocation2] sm:$0x1] 0.0
  %755 = vst [vmem:[#allocation2 + $0x18] sm:$0x1] 0.0
  %756 = vst [vmem:[#allocation2 + $0x11] sm:$0x1] 0.0
  %757 = vst [vmem:[#allocation2 + $0x29] sm:$0x1] 0.0
  %758 = vst [vmem:[#allocation2 + $0x1] sm:$0xff] %v750
  %759 = vst [vmem:[#allocation2 + $0x9] sm:$0xff] %v751
  %760 = vst [vmem:[#allocation2 + $0x19] sm:$0xff] %v752
  %761 = vst [vmem:[#allocation2 + $0x21] sm:$0xff] %v753
  %v762 = vld [vmem:[#allocation2] sm:$0xff]
  %v763 = vld [vmem:[#allocation2 + $0x8] sm:$0xff]
  %v764 = vld [vmem:[#allocation2 + $0x18] sm:$0xff]
  %v765 = vld [vmem:[#allocation2 + $0x20] sm:$0xff]
  %v766 = vpack.c.bf16 %v763, %v762
  %v767 = vpack.c.bf16 %v765, %v764
  %v768 = vpack.c.bf16 %v751, %v750
  %v769 = vpack.c.bf16 %v753, %v752
  %v770 = vld [vmem:[#allocation2 + $0x2] sm:$0xff]
  %v771 = vld [vmem:[#allocation2 + $0xa] sm:$0xff]
  %v772 = vld [vmem:[#allocation2 + $0x1a] sm:$0xff]
  %v773 = vld [vmem:[#allocation2 + $0x22] sm:$0xff]
  %v774 = vpack.c.bf16 %v771, %v770
  %v775 = vpack.c.bf16 %v773, %v772
  %v776 = vld [vmem:[%s2] sm:$0xf]
  %v777 = vld [vmem:[%s2 + $0x4] sm:$0xf]
  %v778 = vld [vmem:[%s2 + $0x8] sm:$0xf]
  %v779 = vld [vmem:[%s2 + $0xc] sm:$0xf]
  %v780 = vld [vmem:[%s2 + $0x10] sm:$0xf]
  %v781 = vld [vmem:[%s2 + $0x14] sm:$0xf]
  %v782 = vld [vmem:[%s2 + $0x18] sm:$0xf]
  %v783 = vld [vmem:[%s2 + $0x1c] sm:$0xf]
  %v784 = vld [vmem:[%s2 + $0x20] sm:$0xf]
  %v785 = vld [vmem:[%s2 + $0x24] sm:$0xf]
  %v786 = vld [vmem:[%s2 + $0x28] sm:$0xf]
  %v787 = vld [vmem:[%s2 + $0x2c] sm:$0xf]
  %v788 = vld [vmem:[%s2 + $0x30] sm:$0xf]
  %v789 = vld [vmem:[%s2 + $0x34] sm:$0xf]
  %v790 = vld [vmem:[%s2 + $0x38] sm:$0xf]
  %v791 = vld [vmem:[%s2 + $0x3c] sm:$0xf]
  %s792 = scalar_lea.vmem %s2, 64
  %v793 = vld [vmem:[%s792] sm:$0xf]
  %v794 = vld [vmem:[%s792 + $0x4] sm:$0xf]
  %v795 = vld [vmem:[%s792 + $0x8] sm:$0xf]
  %v796 = vld [vmem:[%s792 + $0xc] sm:$0xf]
  %v797 = vld [vmem:[%s792 + $0x10] sm:$0xf]
  %v798 = vld [vmem:[%s792 + $0x14] sm:$0xf]
  %v799 = vld [vmem:[%s792 + $0x18] sm:$0xf]
  %v800 = vld [vmem:[%s792 + $0x1c] sm:$0xf]
  %v801 = vld [vmem:[%s792 + $0x20] sm:$0xf]
  %v802 = vld [vmem:[%s792 + $0x24] sm:$0xf]
  %v803 = vld [vmem:[%s792 + $0x28] sm:$0xf]
  %v804 = vld [vmem:[%s792 + $0x2c] sm:$0xf]
  %v805 = vld [vmem:[%s792 + $0x30] sm:$0xf]
  %v806 = vld [vmem:[%s792 + $0x34] sm:$0xf]
  %v807 = vld [vmem:[%s792 + $0x38] sm:$0xf]
  %v808 = vld [vmem:[%s792 + $0x3c] sm:$0xf]
  %v825 = vunpack.c.l.b16 %v793
  %v826 = vunpack.c.l.b16 %v794
  %v827 = vunpack.c.l.b16 %v795
  %v828 = vunpack.c.l.b16 %v796
  %v829 = vunpack.c.l.b16 %v797
  %v830 = vunpack.c.l.b16 %v798
  %v831 = vunpack.c.l.b16 %v799
  %v832 = vunpack.c.l.b16 %v800
  %v833 = vunpack.c.l.b16 %v801
  %v834 = vunpack.c.l.b16 %v802
  %v835 = vunpack.c.l.b16 %v803
  %v836 = vunpack.c.l.b16 %v804
  %v837 = vunpack.c.l.b16 %v805
  %v838 = vunpack.c.l.b16 %v806
  %v839 = vunpack.c.l.b16 %v807
  %v840 = vunpack.c.l.b16 %v808
  %v841 = vpack.c.b16 %v826, %v825
  %v842 = vpack.c.b16 %v828, %v827
  %v843 = vpack.c.b16 %v830, %v829
  %v844 = vpack.c.b16 %v832, %v831
  %v845 = vpack.c.b16 %v834, %v833
  %v846 = vpack.c.b16 %v836, %v835
  %v847 = vpack.c.b16 %v838, %v837
  %v848 = vpack.c.b16 %v840, %v839
  %857 = vmatprep.subr.bf16.mxu0 0
  %858 = vmatpush1.bf16.msra.mxu0 %v841
  %859 = vmatprep.subr.bf16.mxu0 0
  %860 = vmatpush1.bf16.msra.mxu0 %v842
  %861 = vmatprep.subr.bf16.mxu0 0
  %862 = vmatpush1.bf16.msra.mxu0 %v843
  %863 = vmatprep.subr.bf16.mxu0 0
  %864 = vmatpush1.bf16.msra.mxu0 %v844
  %865 = vmatprep.subr.bf16.mxu0 0
  %866 = vmatpush1.bf16.msra.mxu0 %v845
  %867 = vmatprep.subr.bf16.mxu0 0
  %868 = vmatpush1.bf16.msra.mxu0 %v846
  %869 = vmatprep.subr.bf16.mxu0 0
  %870 = vmatpush1.bf16.msra.mxu0 %v847
  %871 = vmatprep.subr.bf16.mxu0 0
  %872 = vmatpush1.bf16.msra.mxu0 %v848
  %873 = vmatprep.subr.bf16.mxu0 0
  %874 = vmatpush1.bf16.msra.mxu0 0
  %875 = vmatprep.subr.bf16.mxu0 0
  %876 = vmatpush1.bf16.msra.mxu0 0
  %877 = vmatprep.subr.bf16.mxu0 0
  %878 = vmatpush1.bf16.msra.mxu0 0
  %879 = vmatprep.subr.bf16.mxu0 0
  %880 = vmatpush1.bf16.msra.mxu0 0
  %881 = vmatprep.subr.bf16.mxu0 0
  %882 = vmatpush1.bf16.msra.mxu0 0
  %883 = vmatprep.subr.bf16.mxu0 0
  %884 = vmatpush1.bf16.msra.mxu0 0
  %885 = vmatprep.subr.bf16.mxu0 0
  %886 = vmatpush1.bf16.msra.mxu0 0
  %887 = vmatprep.subr.bf16.mxu0 0
  %888 = vmatpush1.bf16.msra.mxu0 0
  %889 = vmatprep.mubr.bf16.mxu0 0
  %890 = vmatmul.mubr.bf16.gmra.mrb[0].mxu0 %v768
  %v891 = vpop.f32.mrb[0].mxu0
  %v892 = vadd.f32 0.0, %v891
  %v893 = vpop.f32.mrb[0].mxu0
  %v894 = vpop.f32.mrb[0].mxu0
  %v895 = vadd.f32 0.0, %v894
  %v896 = vpop.f32.mrb[0].mxu0
  %897 = vmatprep.mubr.bf16.mxu0 0
  %898 = vmatmul.mubr.bf16.gmra.mrb[0].mxu0 %v769
  %v899 = vpop.f32.mrb[0].mxu0
  %v900 = vadd.f32 0.0, %v899
  %v901 = vpop.f32.mrb[0].mxu0
  %v902 = vpop.f32.mrb[0].mxu0
  %v903 = vadd.f32 0.0, %v902
  %v904 = vpop.f32.mrb[0].mxu0
  %905 = vdwg.mxu0
  %v922 = vunpack.c.l.b16 %v776
  %v923 = vunpack.c.l.b16 %v777
  %v924 = vunpack.c.l.b16 %v778
  %v925 = vunpack.c.l.b16 %v779
  %v926 = vunpack.c.l.b16 %v780
  %v927 = vunpack.c.l.b16 %v781
  %v928 = vunpack.c.l.b16 %v782
  %v929 = vunpack.c.l.b16 %v783
  %v930 = vunpack.c.l.b16 %v784
  %v931 = vunpack.c.l.b16 %v785
  %v932 = vunpack.c.l.b16 %v786
  %v933 = vunpack.c.l.b16 %v787
  %v934 = vunpack.c.l.b16 %v788
  %v935 = vunpack.c.l.b16 %v789
  %v936 = vunpack.c.l.b16 %v790
  %v937 = vunpack.c.l.b16 %v791
  %v938 = vpack.c.b16 %v923, %v922
  %v939 = vpack.c.b16 %v925, %v924
  %v940 = vpack.c.b16 %v927, %v926
  %v941 = vpack.c.b16 %v929, %v928
  %v942 = vpack.c.b16 %v931, %v930
  %v943 = vpack.c.b16 %v933, %v932
  %v944 = vpack.c.b16 %v935, %v934
  %v945 = vpack.c.b16 %v937, %v936
  %954 = vmatprep.subr.bf16.mxu0 0
  %955 = vmatpush1.bf16.msra.mxu0 %v938
  %956 = vmatprep.subr.bf16.mxu0 0
  %957 = vmatpush1.bf16.msra.mxu0 %v939
  %958 = vmatprep.subr.bf16.mxu0 0
  %959 = vmatpush1.bf16.msra.mxu0 %v940
  %960 = vmatprep.subr.bf16.mxu0 0
  %961 = vmatpush1.bf16.msra.mxu0 %v941
  %962 = vmatprep.subr.bf16.mxu0 0
  %963 = vmatpush1.bf16.msra.mxu0 %v942
  %964 = vmatprep.subr.bf16.mxu0 0
  %965 = vmatpush1.bf16.msra.mxu0 %v943
  %966 = vmatprep.subr.bf16.mxu0 0
  %967 = vmatpush1.bf16.msra.mxu0 %v944
  %968 = vmatprep.subr.bf16.mxu0 0
  %969 = vmatpush1.bf16.msra.mxu0 %v945
  %970 = vmatprep.subr.bf16.mxu0 0
  %971 = vmatpush1.bf16.msra.mxu0 0
  %972 = vmatprep.subr.bf16.mxu0 0
  %973 = vmatpush1.bf16.msra.mxu0 0
  %974 = vmatprep.subr.bf16.mxu0 0
  %975 = vmatpush1.bf16.msra.mxu0 0
  %976 = vmatprep.subr.bf16.mxu0 0
  %977 = vmatpush1.bf16.msra.mxu0 0
  %978 = vmatprep.subr.bf16.mxu0 0
  %979 = vmatpush1.bf16.msra.mxu0 0
  %980 = vmatprep.subr.bf16.mxu0 0
  %981 = vmatpush1.bf16.msra.mxu0 0
  %982 = vmatprep.subr.bf16.mxu0 0
  %983 = vmatpush1.bf16.msra.mxu0 0
  %984 = vmatprep.subr.bf16.mxu0 0
  %985 = vmatpush1.bf16.msra.mxu0 0
  %986 = vmatprep.mubr.bf16.mxu0 0
  %987 = vmatmul.mubr.bf16.gmra.mrb[0].mxu0 %v766
  %v988 = vpop.f32.mrb[0].mxu0
  %v989 = vadd.f32 %v892, %v988
  %v990 = vpop.f32.mrb[0].mxu0
  %v991 = vpop.f32.mrb[0].mxu0
  %v992 = vadd.f32 %v895, %v991
  %v993 = vpop.f32.mrb[0].mxu0
  %994 = vmatprep.mubr.bf16.mxu0 0
  %995 = vmatmul.mubr.bf16.gmra.mrb[0].mxu0 %v767
  %v996 = vpop.f32.mrb[0].mxu0
  %v997 = vadd.f32 %v900, %v996
  %v998 = vpop.f32.mrb[0].mxu0
  %v999 = vpop.f32.mrb[0].mxu0
  %v1000 = vadd.f32 %v903, %v999
  %v1001 = vpop.f32.mrb[0].mxu0
  %1002 = vdwg.mxu0
  %s1003 = scalar_lea.vmem %s2, 128
  %v1004 = vld [vmem:[%s1003] sm:$0xf]
  %v1005 = vld [vmem:[%s1003 + $0x4] sm:$0xf]
  %v1006 = vld [vmem:[%s1003 + $0x8] sm:$0xf]
  %v1007 = vld [vmem:[%s1003 + $0xc] sm:$0xf]
  %v1008 = vld [vmem:[%s1003 + $0x10] sm:$0xf]
  %v1009 = vld [vmem:[%s1003 + $0x14] sm:$0xf]
  %v1010 = vld [vmem:[%s1003 + $0x18] sm:$0xf]
  %v1011 = vld [vmem:[%s1003 + $0x1c] sm:$0xf]
  %v1012 = vld [vmem:[%s1003 + $0x20] sm:$0xf]
  %v1013 = vld [vmem:[%s1003 + $0x24] sm:$0xf]
  %v1014 = vld [vmem:[%s1003 + $0x28] sm:$0xf]
  %v1015 = vld [vmem:[%s1003 + $0x2c] sm:$0xf]
  %v1016 = vld [vmem:[%s1003 + $0x30] sm:$0xf]
  %v1017 = vld [vmem:[%s1003 + $0x34] sm:$0xf]
  %v1018 = vld [vmem:[%s1003 + $0x38] sm:$0xf]
  %v1019 = vld [vmem:[%s1003 + $0x3c] sm:$0xf]
  %v1036 = vunpack.c.l.b16 %v1004
  %v1037 = vunpack.c.l.b16 %v1005
  %v1038 = vunpack.c.l.b16 %v1006
  %v1039 = vunpack.c.l.b16 %v1007
  %v1040 = vunpack.c.l.b16 %v1008
  %v1041 = vunpack.c.l.b16 %v1009
  %v1042 = vunpack.c.l.b16 %v1010
  %v1043 = vunpack.c.l.b16 %v1011
  %v1044 = vunpack.c.l.b16 %v1012
  %v1045 = vunpack.c.l.b16 %v1013
  %v1046 = vunpack.c.l.b16 %v1014
  %v1047 = vunpack.c.l.b16 %v1015
  %v1048 = vunpack.c.l.b16 %v1016
  %v1049 = vunpack.c.l.b16 %v1017
  %v1050 = vunpack.c.l.b16 %v1018
  %v1051 = vunpack.c.l.b16 %v1019
  %v1052 = vpack.c.b16 %v1037, %v1036
  %v1053 = vpack.c.b16 %v1039, %v1038
  %v1054 = vpack.c.b16 %v1041, %v1040
  %v1055 = vpack.c.b16 %v1043, %v1042
  %v1056 = vpack.c.b16 %v1045, %v1044
  %v1057 = vpack.c.b16 %v1047, %v1046
  %v1058 = vpack.c.b16 %v1049, %v1048
  %v1059 = vpack.c.b16 %v1051, %v1050
  %1068 = vmatprep.subr.bf16.mxu0 0
  %1069 = vmatpush1.bf16.msra.mxu0 %v1052
  %1070 = vmatprep.subr.bf16.mxu0 0
  %1071 = vmatpush1.bf16.msra.mxu0 %v1053
  %1072 = vmatprep.subr.bf16.mxu0 0
  %1073 = vmatpush1.bf16.msra.mxu0 %v1054
  %1074 = vmatprep.subr.bf16.mxu0 0
  %1075 = vmatpush1.bf16.msra.mxu0 %v1055
  %1076 = vmatprep.subr.bf16.mxu0 0
  %1077 = vmatpush1.bf16.msra.mxu0 %v1056
  %1078 = vmatprep.subr.bf16.mxu0 0
  %1079 = vmatpush1.bf16.msra.mxu0 %v1057
  %1080 = vmatprep.subr.bf16.mxu0 0
  %1081 = vmatpush1.bf16.msra.mxu0 %v1058
  %1082 = vmatprep.subr.bf16.mxu0 0
  %1083 = vmatpush1.bf16.msra.mxu0 %v1059
  %1084 = vmatprep.subr.bf16.mxu0 0
  %1085 = vmatpush1.bf16.msra.mxu0 0
  %1086 = vmatprep.subr.bf16.mxu0 0
  %1087 = vmatpush1.bf16.msra.mxu0 0
  %1088 = vmatprep.subr.bf16.mxu0 0
  %1089 = vmatpush1.bf16.msra.mxu0 0
  %1090 = vmatprep.subr.bf16.mxu0 0
  %1091 = vmatpush1.bf16.msra.mxu0 0
  %1092 = vmatprep.subr.bf16.mxu0 0
  %1093 = vmatpush1.bf16.msra.mxu0 0
  %1094 = vmatprep.subr.bf16.mxu0 0
  %1095 = vmatpush1.bf16.msra.mxu0 0
  %1096 = vmatprep.subr.bf16.mxu0 0
  %1097 = vmatpush1.bf16.msra.mxu0 0
  %1098 = vmatprep.subr.bf16.mxu0 0
  %1099 = vmatpush1.bf16.msra.mxu0 0
  %1100 = vmatprep.mubr.bf16.mxu0 0
  %1101 = vmatmul.mubr.bf16.gmra.mrb[0].mxu0 %v774
  %v1102 = vpop.f32.mrb[0].mxu0
  %v1103 = vadd.f32 0.0, %v1102
  %v1104 = vpop.f32.mrb[0].mxu0
  %v1105 = vpop.f32.mrb[0].mxu0
  %v1106 = vadd.f32 0.0, %v1105
  %v1107 = vpop.f32.mrb[0].mxu0
  %1108 = vmatprep.mubr.bf16.mxu0 0
  %1109 = vmatmul.mubr.bf16.gmra.mrb[0].mxu0 %v775
  %v1110 = vpop.f32.mrb[0].mxu0
  %v1111 = vadd.f32 0.0, %v1110
  %v1112 = vpop.f32.mrb[0].mxu0
  %v1113 = vpop.f32.mrb[0].mxu0
  %v1114 = vadd.f32 0.0, %v1113
  %v1115 = vpop.f32.mrb[0].mxu0
  %1116 = vdwg.mxu0
  %v1117 = vadd.f32 %v989, %v1103
  %v1118 = vadd.f32 %v992, %v1106
  %v1119 = vadd.f32 %v997, %v1111
  %v1120 = vadd.f32 %v1000, %v1114
  %v1121 = vld [vmem:[%s7] sm:$0x1]
  %v1122 = vld [vmem:[%s8] sm:$0x1]
  %v1123 = vadd.f32 %v1117, %v1118
  %v1124 = vadd.f32 %v1123, %v1119
  %v1125 = vadd.f32 %v1124, %v1120
  %v1126 = vrot.slane %v1125, 4
  %v1127 = vadd.f32 %v1125, %v1126
  %v1128 = vrot.slane %v1127, 2
  %v1129 = vadd.f32 %v1127, %v1128
  %v1130 = vrot.slane %v1129, 1
  %v1131 = vadd.f32 %v1129, %v1130
  %v1132 = vmul.f32 %v1117, %v1117
  %v1133 = vmul.f32 %v1118, %v1118
  %v1134 = vmul.f32 %v1119, %v1119
  %v1135 = vmul.f32 %v1120, %v1120
  %v1136 = vadd.f32 %v1132, %v1133
  %v1137 = vadd.f32 %v1136, %v1134
  %v1138 = vadd.f32 %v1137, %v1135
  %v1139 = vrot.slane %v1138, 4
  %v1140 = vadd.f32 %v1138, %v1139
  %v1141 = vrot.slane %v1140, 2
  %v1142 = vadd.f32 %v1140, %v1141
  %v1143 = vrot.slane %v1142, 1
  %v1144 = vadd.f32 %v1142, %v1143
  %v1145 = vld [vmem:[%s3] sm:$0xff]
  %v1146 = vld [vmem:[%s3 + $0x8] sm:$0xff]
  %v1147 = vld [vmem:[%s3 + $0x10] sm:$0xff]
  %v1148 = vld [vmem:[%s3 + $0x18] sm:$0xff]
  %v1149 = vld [vmem:[%s3 + $0x20] sm:$0xff]
  %v1150 = vld [vmem:[%s3 + $0x28] sm:$0xff]
  %v1151 = vld [vmem:[%s3 + $0x30] sm:$0xff]
  %v1152 = vld [vmem:[%s3 + $0x38] sm:$0xff]
  %v1153 = vld [vmem:[%s3 + $0x40] sm:$0xff]
  %v1154 = vld [vmem:[%s3 + $0x48] sm:$0xff]
  %v1155 = vld [vmem:[%s3 + $0x50] sm:$0xff]
  %v1156 = vld [vmem:[%s3 + $0x58] sm:$0xff]
  %v1157 = vld [vmem:[%s3 + $0x60] sm:$0xff]
  %v1158 = vld [vmem:[%s3 + $0x68] sm:$0xff]
  %v1159 = vld [vmem:[%s3 + $0x70] sm:$0xff]
  %v1160 = vld [vmem:[%s3 + $0x78] sm:$0xff]
  %1161 = vmatprep.subr.mxu0 0.0
  %1162 = vmatpush1.msra.mxu0 %v1145
  %1163 = vmatprep.subr.mxu0 0.0
  %1164 = vmatpush1.msra.mxu0 %v1146
  %1165 = vmatprep.subr.mxu0 0.0
  %1166 = vmatpush1.msra.mxu0 %v1147
  %1167 = vmatprep.subr.mxu0 0.0
  %1168 = vmatpush1.msra.mxu0 %v1148
  %1169 = vmatprep.subr.mxu0 0.0
  %1170 = vmatpush1.msra.mxu0 %v1149
  %1171 = vmatprep.subr.mxu0 0.0
  %1172 = vmatpush1.msra.mxu0 %v1150
  %1173 = vmatprep.subr.mxu0 0.0
  %1174 = vmatpush1.msra.mxu0 %v1151
  %1175 = vmatprep.subr.mxu0 0.0
  %1176 = vmatpush1.msra.mxu0 %v1152
  %1177 = vmatprep.subr.mxu0 0.0
  %1178 = vmatpush1.msra.mxu0 %v1153
  %1179 = vmatprep.subr.mxu0 0.0
  %1180 = vmatpush1.msra.mxu0 %v1154
  %1181 = vmatprep.subr.mxu0 0.0
  %1182 = vmatpush1.msra.mxu0 %v1155
  %1183 = vmatprep.subr.mxu0 0.0
  %1184 = vmatpush1.msra.mxu0 %v1156
  %1185 = vmatprep.subr.mxu0 0.0
  %1186 = vmatpush1.msra.mxu0 %v1157
  %1187 = vmatprep.subr.mxu0 0.0
  %1188 = vmatpush1.msra.mxu0 %v1158
  %1189 = vmatprep.subr.mxu0 0.0
  %1190 = vmatpush1.msra.mxu0 %v1159
  %1191 = vmatprep.subr.mxu0 0.0
  %1192 = vmatpush1.msra.mxu0 %v1160
  %1193 = vmatprep.subr.mxu0 0.0
  %1194 = vmatpush1.msra.mxu0 0.0
  %1195 = vmatprep.subr.mxu0 0.0
  %1196 = vmatpush1.msra.mxu0 0.0
  %1197 = vmatprep.subr.mxu0 0.0
  %1198 = vmatpush1.msra.mxu0 0.0
  %1199 = vmatprep.subr.mxu0 0.0
  %1200 = vmatpush1.msra.mxu0 0.0
  %1201 = vmatprep.subr.mxu0 0.0
  %1202 = vmatpush1.msra.mxu0 0.0
  %1203 = vmatprep.subr.mxu0 0.0
  %1204 = vmatpush1.msra.mxu0 0.0
  %1205 = vmatprep.subr.mxu0 0.0
  %1206 = vmatpush1.msra.mxu0 0.0
  %1207 = vmatprep.subr.mxu0 0.0
  %1208 = vmatpush1.msra.mxu0 0.0
  %1209 = vmatprep.subr.mxu0 0.0
  %1210 = vmatpush1.msra.mxu0 0.0
  %1211 = vmatprep.subr.mxu0 0.0
  %1212 = vmatpush1.msra.mxu0 0.0
  %1213 = vmatprep.subr.mxu0 0.0
  %1214 = vmatpush1.msra.mxu0 0.0
  %1215 = vmatprep.subr.mxu0 0.0
  %1216 = vmatpush1.msra.mxu0 0.0
  %1217 = vmatprep.subr.mxu0 0.0
  %1218 = vmatpush1.msra.mxu0 0.0
  %1219 = vmatprep.subr.mxu0 0.0
  %1220 = vmatpush1.msra.mxu0 0.0
  %1221 = vmatprep.subr.mxu0 0.0
  %1222 = vmatpush1.msra.mxu0 0.0
  %1223 = vmatprep.subr.mxu0 0.0
  %1224 = vmatpush1.msra.mxu0 0.0
  %1225 = vmatprep.mubr.f32.mxu0 0.0
  %1226 = vmatmul.mubr.f32.gmra.mrb[0].mxu0 %v1131
  %v1227 = vpop.f32.mrb[0].mxu0
  %v1228 = vadd.f32 0.0, %v1227
  %v1229 = vpop.f32.mrb[0].mxu0
  %1230 = vdwg.mxu0
  %1231 = vmatprep.subr.mxu0 0.0
  %1232 = vmatpush1.msra.mxu0 %v1145
  %1233 = vmatprep.subr.mxu0 0.0
  %1234 = vmatpush1.msra.mxu0 %v1146
  %1235 = vmatprep.subr.mxu0 0.0
  %1236 = vmatpush1.msra.mxu0 %v1147
  %1237 = vmatprep.subr.mxu0 0.0
  %1238 = vmatpush1.msra.mxu0 %v1148
  %1239 = vmatprep.subr.mxu0 0.0
  %1240 = vmatpush1.msra.mxu0 %v1149
  %1241 = vmatprep.subr.mxu0 0.0
  %1242 = vmatpush1.msra.mxu0 %v1150
  %1243 = vmatprep.subr.mxu0 0.0
  %1244 = vmatpush1.msra.mxu0 %v1151
  %1245 = vmatprep.subr.mxu0 0.0
  %1246 = vmatpush1.msra.mxu0 %v1152
  %1247 = vmatprep.subr.mxu0 0.0
  %1248 = vmatpush1.msra.mxu0 %v1153
  %1249 = vmatprep.subr.mxu0 0.0
  %1250 = vmatpush1.msra.mxu0 %v1154
  %1251 = vmatprep.subr.mxu0 0.0
  %1252 = vmatpush1.msra.mxu0 %v1155
  %1253 = vmatprep.subr.mxu0 0.0
  %1254 = vmatpush1.msra.mxu0 %v1156
  %1255 = vmatprep.subr.mxu0 0.0
  %1256 = vmatpush1.msra.mxu0 %v1157
  %1257 = vmatprep.subr.mxu0 0.0
  %1258 = vmatpush1.msra.mxu0 %v1158
  %1259 = vmatprep.subr.mxu0 0.0
  %1260 = vmatpush1.msra.mxu0 %v1159
  %1261 = vmatprep.subr.mxu0 0.0
  %1262 = vmatpush1.msra.mxu0 %v1160
  %1263 = vmatprep.subr.mxu0 0.0
  %1264 = vmatpush1.msra.mxu0 0.0
  %1265 = vmatprep.subr.mxu0 0.0
  %1266 = vmatpush1.msra.mxu0 0.0
  %1267 = vmatprep.subr.mxu0 0.0
  %1268 = vmatpush1.msra.mxu0 0.0
  %1269 = vmatprep.subr.mxu0 0.0
  %1270 = vmatpush1.msra.mxu0 0.0
  %1271 = vmatprep.subr.mxu0 0.0
  %1272 = vmatpush1.msra.mxu0 0.0
  %1273 = vmatprep.subr.mxu0 0.0
  %1274 = vmatpush1.msra.mxu0 0.0
  %1275 = vmatprep.subr.mxu0 0.0
  %1276 = vmatpush1.msra.mxu0 0.0
  %1277 = vmatprep.subr.mxu0 0.0
  %1278 = vmatpush1.msra.mxu0 0.0
  %1279 = vmatprep.subr.mxu0 0.0
  %1280 = vmatpush1.msra.mxu0 0.0
  %1281 = vmatprep.subr.mxu0 0.0
  %1282 = vmatpush1.msra.mxu0 0.0
  %1283 = vmatprep.subr.mxu0 0.0
  %1284 = vmatpush1.msra.mxu0 0.0
  %1285 = vmatprep.subr.mxu0 0.0
  %1286 = vmatpush1.msra.mxu0 0.0
  %1287 = vmatprep.subr.mxu0 0.0
  %1288 = vmatpush1.msra.mxu0 0.0
  %1289 = vmatprep.subr.mxu0 0.0
  %1290 = vmatpush1.msra.mxu0 0.0
  %1291 = vmatprep.subr.mxu0 0.0
  %1292 = vmatpush1.msra.mxu0 0.0
  %1293 = vmatprep.subr.mxu0 0.0
  %1294 = vmatpush1.msra.mxu0 0.0
  %1295 = vmatprep.mubr.f32.mxu0 0.0
  %1296 = vmatmul.mubr.f32.gmra.mrb[0].mxu0 %v1144
  %v1297 = vpop.f32.mrb[0].mxu0
  %v1298 = vadd.f32 0.0, %v1297
  %v1299 = vpop.f32.mrb[0].mxu0
  %1300 = vdwg.mxu0
  %v1301 = vmul.f32 %v1228, 0.001953125
  %v1302 = vmul.f32 %v1298, 0.001953125
  %v1303 = vmul.f32 %v1301, %v1301
  %v1304 = vsub.f32 %v1302, %v1303
  %v1305 = vmax.f32 %v1304, 0.0
  %v1306 = vadd.f32 %v1305, 1e-05
  %v1307 = vrsqrt.pop %v1306
  %v1308 = vmul.f32 %v1121, %v1307
  %v1309 = vmul.f32 %v1301, %v1308
  %v1310 = vsub.f32 %v1122, %v1309
  %v1311 = vld [vmem:[%s4] sm:$0xff]
  %v1313 = vsel %vm587, %v1308, 0
  %1315 = vmatprep.subr.mxu0 0.0
  %1316 = vmatpush1.msra.mxu0 %v1311
  %1317 = vmatprep.subr.mxu0 0.0
  %1318 = vmatpush1.msra.mxu0 0.0
  %1319 = vmatprep.subr.mxu0 0.0
  %1320 = vmatpush1.msra.mxu0 0.0
  %1321 = vmatprep.subr.mxu0 0.0
  %1322 = vmatpush1.msra.mxu0 0.0
  %1323 = vmatprep.subr.mxu0 0.0
  %1324 = vmatpush1.msra.mxu0 0.0
  %1325 = vmatprep.subr.mxu0 0.0
  %1326 = vmatpush1.msra.mxu0 0.0
  %1327 = vmatprep.subr.mxu0 0.0
  %1328 = vmatpush1.msra.mxu0 0.0
  %1329 = vmatprep.subr.mxu0 0.0
  %1330 = vmatpush1.msra.mxu0 0.0
  %1331 = vmatprep.subr.mxu0 0.0
  %1332 = vmatpush1.msra.mxu0 0.0
  %1333 = vmatprep.subr.mxu0 0.0
  %1334 = vmatpush1.msra.mxu0 0.0
  %1335 = vmatprep.subr.mxu0 0.0
  %1336 = vmatpush1.msra.mxu0 0.0
  %1337 = vmatprep.subr.mxu0 0.0
  %1338 = vmatpush1.msra.mxu0 0.0
  %1339 = vmatprep.subr.mxu0 0.0
  %1340 = vmatpush1.msra.mxu0 0.0
  %1341 = vmatprep.subr.mxu0 0.0
  %1342 = vmatpush1.msra.mxu0 0.0
  %1343 = vmatprep.subr.mxu0 0.0
  %1344 = vmatpush1.msra.mxu0 0.0
  %1345 = vmatprep.subr.mxu0 0.0
  %1346 = vmatpush1.msra.mxu0 0.0
  %1347 = vmatprep.subr.mxu0 0.0
  %1348 = vmatpush1.msra.mxu0 0.0
  %1349 = vmatprep.subr.mxu0 0.0
  %1350 = vmatpush1.msra.mxu0 0.0
  %1351 = vmatprep.subr.mxu0 0.0
  %1352 = vmatpush1.msra.mxu0 0.0
  %1353 = vmatprep.subr.mxu0 0.0
  %1354 = vmatpush1.msra.mxu0 0.0
  %1355 = vmatprep.subr.mxu0 0.0
  %1356 = vmatpush1.msra.mxu0 0.0
  %1357 = vmatprep.subr.mxu0 0.0
  %1358 = vmatpush1.msra.mxu0 0.0
  %1359 = vmatprep.subr.mxu0 0.0
  %1360 = vmatpush1.msra.mxu0 0.0
  %1361 = vmatprep.subr.mxu0 0.0
  %1362 = vmatpush1.msra.mxu0 0.0
  %1363 = vmatprep.subr.mxu0 0.0
  %1364 = vmatpush1.msra.mxu0 0.0
  %1365 = vmatprep.subr.mxu0 0.0
  %1366 = vmatpush1.msra.mxu0 0.0
  %1367 = vmatprep.subr.mxu0 0.0
  %1368 = vmatpush1.msra.mxu0 0.0
  %1369 = vmatprep.subr.mxu0 0.0
  %1370 = vmatpush1.msra.mxu0 0.0
  %1371 = vmatprep.subr.mxu0 0.0
  %1372 = vmatpush1.msra.mxu0 0.0
  %1373 = vmatprep.subr.mxu0 0.0
  %1374 = vmatpush1.msra.mxu0 0.0
  %1375 = vmatprep.subr.mxu0 0.0
  %1376 = vmatpush1.msra.mxu0 0.0
  %1377 = vmatprep.subr.mxu0 0.0
  %1378 = vmatpush1.msra.mxu0 0.0
  %1379 = vmatprep.mubr.f32.mxu0 0.0
  %1380 = vmatmul.mubr.f32.gmra.mrb[0].mxu0 %v1313
  %v1381 = vpop.f32.mrb[0].mxu0
  %v1382 = vadd.f32 0.0, %v1381
  %v1383 = vpop.f32.mrb[0].mxu0
  %1384 = vdwg.mxu0
  %v1386 = vsel %vm587, %v1310, 0
  %1388 = vmatprep.subr.mxu0 0.0
  %1389 = vmatpush1.msra.mxu0 %v1311
  %1390 = vmatprep.subr.mxu0 0.0
  %1391 = vmatpush1.msra.mxu0 0.0
  %1392 = vmatprep.subr.mxu0 0.0
  %1393 = vmatpush1.msra.mxu0 0.0
  %1394 = vmatprep.subr.mxu0 0.0
  %1395 = vmatpush1.msra.mxu0 0.0
  %1396 = vmatprep.subr.mxu0 0.0
  %1397 = vmatpush1.msra.mxu0 0.0
  %1398 = vmatprep.subr.mxu0 0.0
  %1399 = vmatpush1.msra.mxu0 0.0
  %1400 = vmatprep.subr.mxu0 0.0
  %1401 = vmatpush1.msra.mxu0 0.0
  %1402 = vmatprep.subr.mxu0 0.0
  %1403 = vmatpush1.msra.mxu0 0.0
  %1404 = vmatprep.subr.mxu0 0.0
  %1405 = vmatpush1.msra.mxu0 0.0
  %1406 = vmatprep.subr.mxu0 0.0
  %1407 = vmatpush1.msra.mxu0 0.0
  %1408 = vmatprep.subr.mxu0 0.0
  %1409 = vmatpush1.msra.mxu0 0.0
  %1410 = vmatprep.subr.mxu0 0.0
  %1411 = vmatpush1.msra.mxu0 0.0
  %1412 = vmatprep.subr.mxu0 0.0
  %1413 = vmatpush1.msra.mxu0 0.0
  %1414 = vmatprep.subr.mxu0 0.0
  %1415 = vmatpush1.msra.mxu0 0.0
  %1416 = vmatprep.subr.mxu0 0.0
  %1417 = vmatpush1.msra.mxu0 0.0
  %1418 = vmatprep.subr.mxu0 0.0
  %1419 = vmatpush1.msra.mxu0 0.0
  %1420 = vmatprep.subr.mxu0 0.0
  %1421 = vmatpush1.msra.mxu0 0.0
  %1422 = vmatprep.subr.mxu0 0.0
  %1423 = vmatpush1.msra.mxu0 0.0
  %1424 = vmatprep.subr.mxu0 0.0
  %1425 = vmatpush1.msra.mxu0 0.0
  %1426 = vmatprep.subr.mxu0 0.0
  %1427 = vmatpush1.msra.mxu0 0.0
  %1428 = vmatprep.subr.mxu0 0.0
  %1429 = vmatpush1.msra.mxu0 0.0
  %1430 = vmatprep.subr.mxu0 0.0
  %1431 = vmatpush1.msra.mxu0 0.0
  %1432 = vmatprep.subr.mxu0 0.0
  %1433 = vmatpush1.msra.mxu0 0.0
  %1434 = vmatprep.subr.mxu0 0.0
  %1435 = vmatpush1.msra.mxu0 0.0
  %1436 = vmatprep.subr.mxu0 0.0
  %1437 = vmatpush1.msra.mxu0 0.0
  %1438 = vmatprep.subr.mxu0 0.0
  %1439 = vmatpush1.msra.mxu0 0.0
  %1440 = vmatprep.subr.mxu0 0.0
  %1441 = vmatpush1.msra.mxu0 0.0
  %1442 = vmatprep.subr.mxu0 0.0
  %1443 = vmatpush1.msra.mxu0 0.0
  %1444 = vmatprep.subr.mxu0 0.0
  %1445 = vmatpush1.msra.mxu0 0.0
  %1446 = vmatprep.subr.mxu0 0.0
  %1447 = vmatpush1.msra.mxu0 0.0
  %1448 = vmatprep.subr.mxu0 0.0
  %1449 = vmatpush1.msra.mxu0 0.0
  %1450 = vmatprep.subr.mxu0 0.0
  %1451 = vmatpush1.msra.mxu0 0.0
  %1452 = vmatprep.mubr.f32.mxu0 0.0
  %1453 = vmatmul.mubr.f32.gmra.mrb[0].mxu0 %v1386
  %v1454 = vpop.f32.mrb[0].mxu0
  %v1455 = vadd.f32 0.0, %v1454
  %v1456 = vpop.f32.mrb[0].mxu0
  %1457 = vdwg.mxu0
  %v1458 = vlaneseq
  %v1459 = vshrl.u32 %v1458, 7
  %v1460 = vsub.s32 0, %v1459
  %v1461 = vrot.slane %v1382, %v1460
  %v1462 = vmul.f32 %v1117, %v1461
  %v1463 = vmul.f32 %v1118, %v1461
  %v1464 = vmul.f32 %v1119, %v1461
  %v1465 = vmul.f32 %v1120, %v1461
  %v1466 = vlaneseq
  %v1467 = vshrl.u32 %v1466, 7
  %v1468 = vsub.s32 0, %v1467
  %v1469 = vrot.slane %v1455, %v1468
  %v1470 = vadd.f32 %v1462, %v1469
  %v1471 = vadd.f32 %v1463, %v1469
  %v1472 = vadd.f32 %v1464, %v1469
  %v1473 = vadd.f32 %v1465, %v1469
  %v1474 = vadd.f32 %v1470, %v33
  %v1475 = vadd.f32 %v1471, %v34
  %v1476 = vadd.f32 %v1472, %v35
  %v1477 = vadd.f32 %v1473, %v36
  %v1478 = vmax.f32 %v1474, 0.0
  %v1479 = vmax.f32 %v1475, 0.0
  %v1480 = vmax.f32 %v1476, 0.0
  %v1481 = vmax.f32 %v1477, 0.0
  %1482 = vst [vmem:[%s9] sm:$0xff] %v1478
  %1483 = vst [vmem:[%s9 + $0x8] sm:$0xff] %v1479
  %1484 = vst [vmem:[%s9 + $0x10] sm:$0xff] %v1480
  %1485 = vst [vmem:[%s9 + $0x18] sm:$0xff] %v1481
  // Predicated region
  $region38: #{residual_block_forward.1} parent=0 // pred_check
    _
  $region39: #{residual_block_forward.1} parent=0 // pred_check_branch
    %1487 = sbr.rel (0) target = $region41
  $region40: #{residual_block_forward.1} parent=0 // pred_region
    _
  $region41: #{residual_block_forward.1} parent=0 // pred_fallthru
    _
  // Predicated region
  $region42: #{residual_block_forward.1} parent=0 // pred_check
    _
  $region43: #{residual_block_forward.1} parent=0 // pred_check_branch
    %1489 = sbr.rel (0) target = $region45
  $region44: #{residual_block_forward.1} parent=0 // pred_region
    _
  $region45: #{residual_block_forward.1} parent=0 // pred_fallthru
    _

</llo_original>
